<compile_context>
chip_gen: v6e
topology: v6e:2x2x1
jax: 0.10.0
libtpu: 0.0.40
codegen_flags: <defaults>
</compile_context>

<pallas_src>
import numpy as np
import jax
import jax.numpy as jnp
from jax.experimental import pallas as pl
from jax.experimental.pallas import tpu as pltpu


# ----------------------------------------------------------------------------
# Helpers
# ----------------------------------------------------------------------------
def _round_up(n, m):
    return ((n + m - 1) // m) * m


def _cdiv(a, b):
    return -(-a // b)


def _pad_to(a, shape):
    return jnp.pad(a, [(0, t - s) for s, t in zip(a.shape, shape)])


def _phase_patches_cm(img, k):
    """Channel-major im2col, separated by 2x2 max-pool phase.

    img: (C, B, H, W)  ->  (4, C*k*k, B*OHp*OWp)

    Row order matches torch weight.reshape(OutC, -1): (ic, kh, kw).
    Column order: (b, pooled_y, pooled_x).  Leading axis enumerates the 2x2
    pool window so pooling can be fused into the conv kernel.  Consuming the
    conv kernels' native channel-major layout avoids a materialized NCHW
    transpose between layers.  Pure slice/stack/transpose XLA glue (bf16).
    """
    C, B, H, W = img.shape
    OH, OW = H - k + 1, W - k + 1
    assert OH % 2 == 0 and OW % 2 == 0, "conv output must be even for 2x2 pool"
    OHp, OWp = OH // 2, OW // 2
    taps = []
    for di in range(k):
        for dj in range(k):
            s = img[:, :, di:di + 2 * OHp, dj:dj + 2 * OWp]
            taps.append(s.reshape(C, B, OHp, 2, OWp, 2))
    p = jnp.stack(taps, axis=1)               # (C, kk, B, OHp, 2, OWp, 2)
    p = p.transpose(4, 6, 0, 1, 2, 3, 5)      # (2, 2, C, kk, B, OHp, OWp)
    return p.reshape(4, C * k * k, B * OHp * OWp), (B, OHp, OWp)


def _pick_m_tile(Mp, m_tile, min_steps=4):
    """Full block if it fits, else a 128-multiple tile that keeps >= min_steps
    grid steps (v7x megacore sharding + pipelining) without exceeding m_tile."""
    if Mp <= m_tile:
        return Mp
    return min(m_tile, max(512, _round_up(_cdiv(Mp, min_steps), 128)))


# ----------------------------------------------------------------------------
# Pallas kernels
# ----------------------------------------------------------------------------
def conv_bn_relu_pool_kernel(p_ref, w_ref, shift_ref, o_ref):
    """Fused Conv2d (matmul over pool-phase patches) + BN(eval) + MaxPool + ReLU.

    p_ref:     (4, K, Mt)  bf16  im2col patches, one slab per 2x2 pool phase
    w_ref:     (C, K)      bf16  conv weights with BN scale pre-folded
    shift_ref: (C, 1)      f32   beta + (bias - mean) * scale
    o_ref:     (C, Mt)     bf16  pooled activations, lane-dense columns (b,y,x)
    """
    shift = shift_ref[...]

    def phase(k):
        z = jnp.dot(w_ref[...], p_ref[k], preferred_element_type=jnp.float32)
        return z + shift                     # BN affine before max (scale folded)

    y = jnp.maximum(jnp.maximum(phase(0), phase(1)),
                    jnp.maximum(phase(2), phase(3)))
    o_ref[...] = jnp.maximum(y, 0.0).astype(o_ref.dtype)   # ReLU commutes w/ max


def mlp_kernel(x_ref, w0_ref, b0_ref, w1_ref, b1_ref, w2_ref, b2_ref, o_ref):
    """Fused fc->ReLU->fc1->ReLU->fc2 with lane-dense (128-padded) hidden dims.
    bf16 MXU operands, f32 accumulation, f32 bias/ReLU epilogues."""
    h = jnp.dot(x_ref[...], w0_ref[...], preferred_element_type=jnp.float32)
    h = jnp.maximum(h + b0_ref[...], 0.0)
    h = jnp.dot(h.astype(jnp.bfloat16), w1_ref[...],
                preferred_element_type=jnp.float32)
    h = jnp.maximum(h + b1_ref[...], 0.0)
    o_ref[...] = jnp.dot(h.astype(jnp.bfloat16), w2_ref[...],
                         preferred_element_type=jnp.float32) + b2_ref[...]


# ----------------------------------------------------------------------------
# Wrappers
# ----------------------------------------------------------------------------
def conv_bn_relu_pool(x_cm, w, b, gamma, beta, mean, var,
                      eps=1e-5, m_tile=8192):
    """Conv2d(stride=1,pad=0)+BN(eval)+ReLU+MaxPool2x2 in one pallas_call.

    x_cm: (InC, B, H, W) bf16 (channel-major)
    -> (OutC, B*OHp*OWp) bf16, columns ordered (b, y, x).
    """
    out_c, in_c, k, _ = w.shape
    patches, (B, OHp, OWp) = _phase_patches_cm(x_cm, k)      # bf16 already
    K, Mp = patches.shape[1], patches.shape[2]

    # Fold BN scale into the conv weights; keep only "+ shift" in the kernel.
    scale = (gamma / jnp.sqrt(var + eps)).astype(jnp.float32)
    w_mat = (w.reshape(out_c, in_c * k * k).astype(jnp.float32)
             * scale[:, None]).astype(jnp.bfloat16)
    shift = (beta + (b - mean) * scale).astype(jnp.float32).reshape(-1, 1)

    mt = _pick_m_tile(Mp, m_tile)
    grid = (pl.cdiv(Mp, mt),)

    out = pl.pallas_call(
        conv_bn_relu_pool_kernel,
        out_shape=jax.ShapeDtypeStruct((out_c, Mp), jnp.bfloat16),
        grid=grid,
        in_specs=[
            pl.BlockSpec((4, K, mt), lambda i: (0, 0, i)),
            pl.BlockSpec((out_c, K), lambda i: (0, 0)),
            pl.BlockSpec((out_c, 1), lambda i: (0, 0)),
        ],
        out_specs=pl.BlockSpec((out_c, mt), lambda i: (0, i)),
        compiler_params=pltpu.CompilerParams(
            dimension_semantics=("parallel",),
            # mt=8192 conv2 patch blocks double-buffered ~ 19 MB: above v5e's
            # 16 MiB scoped default, comfortably inside v7x's 64 MiB physical.
            vmem_limit_bytes=48 * 1024 * 1024),
    )(patches, w_mat, shift)
    return out, (B, OHp, OWp)


def mlp_head(x, w0, b0, w1, b1, w2, b2, b_tile=1024):
    """x: (B, 400) -> (B, num_classes). Hidden/output dims zero-padded to 128."""
    B, D0 = x.shape
    H1 = _round_up(w0.shape[1], 128)
    H2 = _round_up(w1.shape[1], 128)
    NC = w2.shape[1]
    NCP = _round_up(NC, 128)

    w0p = _pad_to(w0, (D0, H1)).astype(jnp.bfloat16)
    b0p = _pad_to(b0.reshape(1, -1), (1, H1)).astype(jnp.float32)
    w1p = _pad_to(w1, (H1, H2)).astype(jnp.bfloat16)
    b1p = _pad_to(b1.reshape(1, -1), (1, H2)).astype(jnp.float32)
    w2p = _pad_to(w2, (H2, NCP)).astype(jnp.bfloat16)
    b2p = _pad_to(b2.reshape(1, -1), (1, NCP)).astype(jnp.float32)

    bt = B if B <= b_tile else b_tile
    grid = (pl.cdiv(B, bt),)

    out = pl.pallas_call(
        mlp_kernel,
        out_shape=jax.ShapeDtypeStruct((B, NCP), jnp.float32),
        grid=grid,
        in_specs=[
            pl.BlockSpec((bt, D0), lambda i: (i, 0)),
            pl.BlockSpec((D0, H1), lambda i: (0, 0)),
            pl.BlockSpec((1, H1), lambda i: (0, 0)),
            pl.BlockSpec((H1, H2), lambda i: (0, 0)),
            pl.BlockSpec((1, H2), lambda i: (0, 0)),
            pl.BlockSpec((H2, NCP), lambda i: (0, 0)),
            pl.BlockSpec((1, NCP), lambda i: (0, 0)),
        ],
        out_specs=pl.BlockSpec((bt, NCP), lambda i: (i, 0)),
        compiler_params=pltpu.CompilerParams(dimension_semantics=("parallel",)),
    )(x.astype(jnp.bfloat16), w0p, b0p, w1p, b1p, w2p, b2p)
    return out[:, :NC]


# ----------------------------------------------------------------------------
# Full forward pass
# ----------------------------------------------------------------------------
def task_icons_net_forward(x, params):
    # Cast to bf16 once, before any im2col glue (halves the glue HBM traffic).
    # Channel-major transpose on (B,1,H,W) is a free reshape (size-1 channel).
    x_cm = x.astype(jnp.bfloat16).transpose(1, 0, 2, 3)        # (1, B, 32, 32)

    # layer1: Conv2d(1->6, k=5) + BN + ReLU + MaxPool2x2  (one fused kernel)
    h1, (B, P1h, P1w) = conv_bn_relu_pool(
        x_cm, params["w_conv1"], params["b_conv1"],
        params["bn1_gamma"], params["bn1_beta"],
        params["bn1_mean"], params["bn1_var"])
    # (6, B*14*14) bf16 -> channel-major image: a *free* reshape, no transpose.
    h1_cm = h1.reshape(h1.shape[0], B, P1h, P1w)               # (6, B, 14, 14)

    # layer2: Conv2d(6->16, k=5) + BN + ReLU + MaxPool2x2  (one fused kernel)
    h2, (_, P2h, P2w) = conv_bn_relu_pool(
        h1_cm, params["w_conv2"], params["b_conv2"],
        params["bn2_gamma"], params["bn2_beta"],
        params["bn2_mean"], params["bn2_var"])
    # flatten in NCHW order, same as torch .reshape(B, -1): features = (c, y, x)
    c2 = h2.shape[0]
    feat = h2.reshape(c2, B, P2h * P2w).transpose(1, 0, 2).reshape(B, -1)

    # fc -> relu -> fc1 -> relu -> fc2  (one fused kernel)
    return mlp_head(feat,
                    params["w_fc0"], params["b_fc0"],
                    params["w_fc1"], params["b_fc1"],
                    params["w_fc2"], params["b_fc2"])


# ----------------------------------------------------------------------------
# Pure-JAX reference (f32) for a correctness sanity check
# ----------------------------------------------------------------------------
def _reference_forward(x, params, eps=1e-5):
    def layer(h, w, b, gamma, beta, mean, var):
        z = jax.lax.conv_general_dilated(
            h, w, window_strides=(1, 1), padding="VALID",
            dimension_numbers=("NCHW", "OIHW", "NCHW"))
        z = z + b[None, :, None, None]
        z = (z - mean[None, :, None, None]) / jnp.sqrt(var[None, :, None, None] + eps)
        z = z * gamma[None, :, None, None] + beta[None, :, None, None]
        z = jnp.maximum(z, 0.0)
        return jax.lax.reduce_window(z, -jnp.inf, jax.lax.max,
                                     (1, 1, 2, 2), (1, 1, 2, 2), "VALID")

    h = layer(x, params["w_conv1"], params["b_conv1"], params["bn1_gamma"],
              params["bn1_beta"], params["bn1_mean"], params["bn1_var"])
    h = layer(h, params["w_conv2"], params["b_conv2"], params["bn2_gamma"],
              params["bn2_beta"], params["bn2_mean"], params["bn2_var"])
    h = h.reshape(h.shape[0], -1)
    h = jnp.maximum(h @ params["w_fc0"] + params["b_fc0"], 0.0)
    h = jnp.maximum(h @ params["w_fc1"] + params["b_fc1"], 0.0)
    return h @ params["w_fc2"] + params["b_fc2"]


def init_params(key, num_classes):
    ks = jax.random.split(key, 12)
    return {
        "w_conv1": jax.random.normal(ks[0], (6, 1, 5, 5), jnp.float32) * 0.1,
        "b_conv1": jax.random.normal(ks[1], (6,), jnp.float32) * 0.01,
        "bn1_gamma": 1.0 + 0.05 * jax.random.normal(ks[2], (6,), jnp.float32),
        "bn1_beta": 0.05 * jax.random.normal(ks[3], (6,), jnp.float32),
        "bn1_mean": jnp.zeros((6,), jnp.float32),
        "bn1_var": jnp.ones((6,), jnp.float32),
        "w_conv2": jax.random.normal(ks[4], (16, 6, 5, 5), jnp.float32) * 0.05,
        "b_conv2": jax.random.normal(ks[5], (16,), jnp.float32) * 0.01,
        "bn2_gamma": 1.0 + 0.05 * jax.random.normal(ks[6], (16,), jnp.float32),
        "bn2_beta": 0.05 * jax.random.normal(ks[7], (16,), jnp.float32),
        "bn2_mean": jnp.zeros((16,), jnp.float32),
        "bn2_var": jnp.ones((16,), jnp.float32),
        "w_fc0": jax.random.normal(ks[8], (400, 120), jnp.float32) * 0.05,
        "b_fc0": jnp.zeros((120,), jnp.float32),
        "w_fc1": jax.random.normal(ks[9], (120, 84), jnp.float32) * 0.09,
        "b_fc1": jnp.zeros((84,), jnp.float32),
        "w_fc2": jax.random.normal(ks[10], (84, num_classes), jnp.float32) * 0.1,
        "b_fc2": jnp.zeros((num_classes,), jnp.float32),
    }


if __name__ == "__main__":
    num_classes = 10
    batch = 2
    key = jax.random.PRNGKey(0)
    k_x, k_p = jax.random.split(key)

    # Input must be (B, 1, 32, 32): 32 -conv5-> 28 -pool-> 14 -conv5-> 10 -pool-> 5.
    x = jax.random.normal(k_x, (batch, 1, 32, 32), jnp.float32)
    params = init_params(k_p, num_classes)

    fwd = jax.jit(task_icons_net_forward)
    logits = fwd(x, params)
    jax.block_until_ready(logits)

    assert logits.shape == (batch, num_classes), logits.shape
    assert logits.dtype == jnp.float32

    # Correctness check vs f32 reference (generous tolerance for bf16 MXU drift).
    ref = jax.jit(_reference_forward)(x, params)
    jax.block_until_ready(ref)
    np.testing.assert_allclose(np.asarray(logits), np.asarray(ref),
                               rtol=3e-2, atol=3e-2)
    print("KERNEL_OK")
</pallas_src>

<mosaic_0001>
module attributes {stable_mosaic.version = 11 : i64} {
  func.func @conv_bn_relu_pool_kernel(%arg0: i32, %arg1: memref<4x25x392xbf16, #tpu.memory_space<vmem>>, %arg2: memref<6x25xbf16, #tpu.memory_space<vmem>>, %arg3: memref<6x1xf32, #tpu.memory_space<vmem>>, %arg4: memref<6x392xbf16, #tpu.memory_space<vmem>>) attributes {dimension_semantics = [#tpu.dimension_semantics<parallel>], iteration_bounds = array<i64: 1>, scalar_prefetch = 0 : i64, scratch_operands = 0 : i64, tpu.core_type = #tpu.core_type<tc>, window_params = [{transform_indices = @transform_0, window_bounds = array<i64: 4, 25, 392>}, {pipeline_mode = #tpu.pipeline_mode<synchronous>, transform_indices = @transform_1, window_bounds = array<i64: 6, 25>}, {pipeline_mode = #tpu.pipeline_mode<synchronous>, transform_indices = @transform_2, window_bounds = array<i64: 6, 1>}, {transform_indices = @transform_3, window_bounds = array<i64: 6, 392>}]} {
    %c0 = arith.constant 0 : index
    %c0_0 = arith.constant 0 : index
    %0 = vector.load %arg3[%c0, %c0_0] : memref<6x1xf32, #tpu.memory_space<vmem>>, vector<6x1xf32>
    %c0_1 = arith.constant 0 : index
    %c0_2 = arith.constant 0 : index
    %1 = vector.load %arg2[%c0_1, %c0_2] : memref<6x25xbf16, #tpu.memory_space<vmem>>, vector<6x25xbf16>
    %c0_3 = arith.constant 0 : index
    %c0_4 = arith.constant 0 : index
    %c0_5 = arith.constant 0 : index
    %2 = vector.load %arg1[%c0_3, %c0_4, %c0_5] : memref<4x25x392xbf16, #tpu.memory_space<vmem>>, vector<1x25x392xbf16>
    %3 = vector.shape_cast %2 : vector<1x25x392xbf16> to vector<25x392xbf16>
    %cst = arith.constant dense<0.000000e+00> : vector<6x392xf32>
    %4 = tpu.matmul %1, %3, %cst {dimension_numbers = #tpu.dot_dimension_numbers<[1], [0], [0], [1], [0, 0, 1, 1], [], []>} : vector<6x25xbf16>, vector<25x392xbf16>, vector<6x392xf32> -> vector<6x392xf32>
    %5 = vector.broadcast %0 : vector<6x1xf32> to vector<6x392xf32>
    %6 = arith.addf %4, %5 : vector<6x392xf32>
    %c0_6 = arith.constant 0 : index
    %c0_7 = arith.constant 0 : index
    %7 = vector.load %arg2[%c0_6, %c0_7] : memref<6x25xbf16, #tpu.memory_space<vmem>>, vector<6x25xbf16>
    %c1 = arith.constant 1 : index
    %c0_8 = arith.constant 0 : index
    %c0_9 = arith.constant 0 : index
    %8 = vector.load %arg1[%c1, %c0_8, %c0_9] : memref<4x25x392xbf16, #tpu.memory_space<vmem>>, vector<1x25x392xbf16>
    %9 = vector.shape_cast %8 : vector<1x25x392xbf16> to vector<25x392xbf16>
    %cst_10 = arith.constant dense<0.000000e+00> : vector<6x392xf32>
    %10 = tpu.matmul %7, %9, %cst_10 {dimension_numbers = #tpu.dot_dimension_numbers<[1], [0], [0], [1], [0, 0, 1, 1], [], []>} : vector<6x25xbf16>, vector<25x392xbf16>, vector<6x392xf32> -> vector<6x392xf32>
    %11 = vector.broadcast %0 : vector<6x1xf32> to vector<6x392xf32>
    %12 = arith.addf %10, %11 : vector<6x392xf32>
    %13 = arith.maximumf %6, %12 : vector<6x392xf32>
    %c0_11 = arith.constant 0 : index
    %c0_12 = arith.constant 0 : index
    %14 = vector.load %arg2[%c0_11, %c0_12] : memref<6x25xbf16, #tpu.memory_space<vmem>>, vector<6x25xbf16>
    %c2 = arith.constant 2 : index
    %c0_13 = arith.constant 0 : index
    %c0_14 = arith.constant 0 : index
    %15 = vector.load %arg1[%c2, %c0_13, %c0_14] : memref<4x25x392xbf16, #tpu.memory_space<vmem>>, vector<1x25x392xbf16>
    %16 = vector.shape_cast %15 : vector<1x25x392xbf16> to vector<25x392xbf16>
    %cst_15 = arith.constant dense<0.000000e+00> : vector<6x392xf32>
    %17 = tpu.matmul %14, %16, %cst_15 {dimension_numbers = #tpu.dot_dimension_numbers<[1], [0], [0], [1], [0, 0, 1, 1], [], []>} : vector<6x25xbf16>, vector<25x392xbf16>, vector<6x392xf32> -> vector<6x392xf32>
    %18 = vector.broadcast %0 : vector<6x1xf32> to vector<6x392xf32>
    %19 = arith.addf %17, %18 : vector<6x392xf32>
    %c0_16 = arith.constant 0 : index
    %c0_17 = arith.constant 0 : index
    %20 = vector.load %arg2[%c0_16, %c0_17] : memref<6x25xbf16, #tpu.memory_space<vmem>>, vector<6x25xbf16>
    %c3 = arith.constant 3 : index
    %c0_18 = arith.constant 0 : index
    %c0_19 = arith.constant 0 : index
    %21 = vector.load %arg1[%c3, %c0_18, %c0_19] : memref<4x25x392xbf16, #tpu.memory_space<vmem>>, vector<1x25x392xbf16>
    %22 = vector.shape_cast %21 : vector<1x25x392xbf16> to vector<25x392xbf16>
    %cst_20 = arith.constant dense<0.000000e+00> : vector<6x392xf32>
    %23 = tpu.matmul %20, %22, %cst_20 {dimension_numbers = #tpu.dot_dimension_numbers<[1], [0], [0], [1], [0, 0, 1, 1], [], []>} : vector<6x25xbf16>, vector<25x392xbf16>, vector<6x392xf32> -> vector<6x392xf32>
    %24 = vector.broadcast %0 : vector<6x1xf32> to vector<6x392xf32>
    %25 = arith.addf %23, %24 : vector<6x392xf32>
    %26 = arith.maximumf %19, %25 : vector<6x392xf32>
    %27 = arith.maximumf %13, %26 : vector<6x392xf32>
    %cst_21 = arith.constant 0.000000e+00 : f32
    %28 = vector.broadcast %cst_21 : f32 to vector<6x392xf32>
    %29 = arith.maximumf %27, %28 : vector<6x392xf32>
    %30 = arith.truncf %29 : vector<6x392xf32> to vector<6x392xbf16>
    %c0_22 = arith.constant 0 : index
    %c0_23 = arith.constant 0 : index
    %31 = vector.load %arg4[%c0_22, %c0_23] : memref<6x392xbf16, #tpu.memory_space<vmem>>, vector<6x392xbf16>
    tpu.vector_store %arg4[%c0_22, %c0_23], %30 {strides = array<i32>} : memref<6x392xbf16, #tpu.memory_space<vmem>>, vector<6x392xbf16>,
    return
  }
  func.func @transform_0(%arg0: i32) -> (i32, i32, i32) {
    %c0_i32 = arith.constant 0 : i32
    %c0_i32_0 = arith.constant 0 : i32
    %c0_i32_1 = arith.constant 0 : i32
    return %c0_i32, %c0_i32_0, %arg0 : i32, i32, i32
  }
  func.func @transform_1(%arg0: i32) -> (i32, i32) {
    %c0_i32 = arith.constant 0 : i32
    %c0_i32_0 = arith.constant 0 : i32
    %c0_i32_1 = arith.constant 0 : i32
    return %c0_i32, %c0_i32_0 : i32, i32
  }
  func.func @transform_2(%arg0: i32) -> (i32, i32) {
    %c0_i32 = arith.constant 0 : i32
    %c0_i32_0 = arith.constant 0 : i32
    %c0_i32_1 = arith.constant 0 : i32
    return %c0_i32, %c0_i32_0 : i32, i32
  }
  func.func @transform_3(%arg0: i32) -> (i32, i32) {
    %c0_i32 = arith.constant 0 : i32
    %c0_i32_0 = arith.constant 0 : i32
    return %c0_i32, %arg0 : i32, i32
  }
}

module attributes {stable_mosaic.version = 11 : i64} {
  func.func @conv_bn_relu_pool_kernel(%arg0: i32, %arg1: memref<4x150x50xbf16, #tpu.memory_space<vmem>>, %arg2: memref<16x150xbf16, #tpu.memory_space<vmem>>, %arg3: memref<16x1xf32, #tpu.memory_space<vmem>>, %arg4: memref<16x50xbf16, #tpu.memory_space<vmem>>) attributes {dimension_semantics = [#tpu.dimension_semantics<parallel>], iteration_bounds = array<i64: 1>, scalar_prefetch = 0 : i64, scratch_operands = 0 : i64, tpu.core_type = #tpu.core_type<tc>, window_params = [{transform_indices = @transform_0, window_bounds = array<i64: 4, 150, 50>}, {pipeline_mode = #tpu.pipeline_mode<synchronous>, transform_indices = @transform_1, window_bounds = array<i64: 16, 150>}, {pipeline_mode = #tpu.pipeline_mode<synchronous>, transform_indices = @transform_2, window_bounds = array<i64: 16, 1>}, {transform_indices = @transform_3, window_bounds = array<i64: 16, 50>}]} {
    %c0 = arith.constant 0 : index
    %c0_0 = arith.constant 0 : index
    %0 = vector.load %arg3[%c0, %c0_0] : memref<16x1xf32, #tpu.memory_space<vmem>>, vector<16x1xf32>
    %c0_1 = arith.constant 0 : index
    %c0_2 = arith.constant 0 : index
    %1 = vector.load %arg2[%c0_1, %c0_2] : memref<16x150xbf16, #tpu.memory_space<vmem>>, vector<16x150xbf16>
    %c0_3 = arith.constant 0 : index
    %c0_4 = arith.constant 0 : index
    %c0_5 = arith.constant 0 : index
    %2 = vector.load %arg1[%c0_3, %c0_4, %c0_5] : memref<4x150x50xbf16, #tpu.memory_space<vmem>>, vector<1x150x50xbf16>
    %3 = vector.shape_cast %2 : vector<1x150x50xbf16> to vector<150x50xbf16>
    %cst = arith.constant dense<0.000000e+00> : vector<16x50xf32>
    %4 = tpu.matmul %1, %3, %cst {dimension_numbers = #tpu.dot_dimension_numbers<[1], [0], [0], [1], [0, 0, 1, 1], [], []>} : vector<16x150xbf16>, vector<150x50xbf16>, vector<16x50xf32> -> vector<16x50xf32>
    %5 = vector.broadcast %0 : vector<16x1xf32> to vector<16x50xf32>
    %6 = arith.addf %4, %5 : vector<16x50xf32>
    %c0_6 = arith.constant 0 : index
    %c0_7 = arith.constant 0 : index
    %7 = vector.load %arg2[%c0_6, %c0_7] : memref<16x150xbf16, #tpu.memory_space<vmem>>, vector<16x150xbf16>
    %c1 = arith.constant 1 : index
    %c0_8 = arith.constant 0 : index
    %c0_9 = arith.constant 0 : index
    %8 = vector.load %arg1[%c1, %c0_8, %c0_9] : memref<4x150x50xbf16, #tpu.memory_space<vmem>>, vector<1x150x50xbf16>
    %9 = vector.shape_cast %8 : vector<1x150x50xbf16> to vector<150x50xbf16>
    %cst_10 = arith.constant dense<0.000000e+00> : vector<16x50xf32>
    %10 = tpu.matmul %7, %9, %cst_10 {dimension_numbers = #tpu.dot_dimension_numbers<[1], [0], [0], [1], [0, 0, 1, 1], [], []>} : vector<16x150xbf16>, vector<150x50xbf16>, vector<16x50xf32> -> vector<16x50xf32>
    %11 = vector.broadcast %0 : vector<16x1xf32> to vector<16x50xf32>
    %12 = arith.addf %10, %11 : vector<16x50xf32>
    %13 = arith.maximumf %6, %12 : vector<16x50xf32>
    %c0_11 = arith.constant 0 : index
    %c0_12 = arith.constant 0 : index
    %14 = vector.load %arg2[%c0_11, %c0_12] : memref<16x150xbf16, #tpu.memory_space<vmem>>, vector<16x150xbf16>
    %c2 = arith.constant 2 : index
    %c0_13 = arith.constant 0 : index
    %c0_14 = arith.constant 0 : index
    %15 = vector.load %arg1[%c2, %c0_13, %c0_14] : memref<4x150x50xbf16, #tpu.memory_space<vmem>>, vector<1x150x50xbf16>
    %16 = vector.shape_cast %15 : vector<1x150x50xbf16> to vector<150x50xbf16>
    %cst_15 = arith.constant dense<0.000000e+00> : vector<16x50xf32>
    %17 = tpu.matmul %14, %16, %cst_15 {dimension_numbers = #tpu.dot_dimension_numbers<[1], [0], [0], [1], [0, 0, 1, 1], [], []>} : vector<16x150xbf16>, vector<150x50xbf16>, vector<16x50xf32> -> vector<16x50xf32>
    %18 = vector.broadcast %0 : vector<16x1xf32> to vector<16x50xf32>
    %19 = arith.addf %17, %18 : vector<16x50xf32>
    %c0_16 = arith.constant 0 : index
    %c0_17 = arith.constant 0 : index
    %20 = vector.load %arg2[%c0_16, %c0_17] : memref<16x150xbf16, #tpu.memory_space<vmem>>, vector<16x150xbf16>
    %c3 = arith.constant 3 : index
    %c0_18 = arith.constant 0 : index
    %c0_19 = arith.constant 0 : index
    %21 = vector.load %arg1[%c3, %c0_18, %c0_19] : memref<4x150x50xbf16, #tpu.memory_space<vmem>>, vector<1x150x50xbf16>
    %22 = vector.shape_cast %21 : vector<1x150x50xbf16> to vector<150x50xbf16>
    %cst_20 = arith.constant dense<0.000000e+00> : vector<16x50xf32>
    %23 = tpu.matmul %20, %22, %cst_20 {dimension_numbers = #tpu.dot_dimension_numbers<[1], [0], [0], [1], [0, 0, 1, 1], [], []>} : vector<16x150xbf16>, vector<150x50xbf16>, vector<16x50xf32> -> vector<16x50xf32>
    %24 = vector.broadcast %0 : vector<16x1xf32> to vector<16x50xf32>
    %25 = arith.addf %23, %24 : vector<16x50xf32>
    %26 = arith.maximumf %19, %25 : vector<16x50xf32>
    %27 = arith.maximumf %13, %26 : vector<16x50xf32>
    %cst_21 = arith.constant 0.000000e+00 : f32
    %28 = vector.broadcast %cst_21 : f32 to vector<16x50xf32>
    %29 = arith.maximumf %27, %28 : vector<16x50xf32>
    %30 = arith.truncf %29 : vector<16x50xf32> to vector<16x50xbf16>
    %c0_22 = arith.constant 0 : index
    %c0_23 = arith.constant 0 : index
    %31 = vector.load %arg4[%c0_22, %c0_23] : memref<16x50xbf16, #tpu.memory_space<vmem>>, vector<16x50xbf16>
    tpu.vector_store %arg4[%c0_22, %c0_23], %30 {strides = array<i32>} : memref<16x50xbf16, #tpu.memory_space<vmem>>, vector<16x50xbf16>,
    return
  }
  func.func @transform_0(%arg0: i32) -> (i32, i32, i32) {
    %c0_i32 = arith.constant 0 : i32
    %c0_i32_0 = arith.constant 0 : i32
    %c0_i32_1 = arith.constant 0 : i32
    return %c0_i32, %c0_i32_0, %arg0 : i32, i32, i32
  }
  func.func @transform_1(%arg0: i32) -> (i32, i32) {
    %c0_i32 = arith.constant 0 : i32
    %c0_i32_0 = arith.constant 0 : i32
    %c0_i32_1 = arith.constant 0 : i32
    return %c0_i32, %c0_i32_0 : i32, i32
  }
  func.func @transform_2(%arg0: i32) -> (i32, i32) {
    %c0_i32 = arith.constant 0 : i32
    %c0_i32_0 = arith.constant 0 : i32
    %c0_i32_1 = arith.constant 0 : i32
    return %c0_i32, %c0_i32_0 : i32, i32
  }
  func.func @transform_3(%arg0: i32) -> (i32, i32) {
    %c0_i32 = arith.constant 0 : i32
    %c0_i32_0 = arith.constant 0 : i32
    return %c0_i32, %arg0 : i32, i32
  }
}

module attributes {stable_mosaic.version = 11 : i64} {
  func.func @mlp_kernel(%arg0: i32, %arg1: memref<2x400xbf16, #tpu.memory_space<vmem>>, %arg2: memref<400x128xbf16, #tpu.memory_space<vmem>>, %arg3: memref<1x128xf32, #tpu.memory_space<vmem>>, %arg4: memref<128x128xbf16, #tpu.memory_space<vmem>>, %arg5: memref<1x128xf32, #tpu.memory_space<vmem>>, %arg6: memref<128x128xbf16, #tpu.memory_space<vmem>>, %arg7: memref<1x128xf32, #tpu.memory_space<vmem>>, %arg8: memref<2x128xf32, #tpu.memory_space<vmem>>) attributes {dimension_semantics = [#tpu.dimension_semantics<parallel>], iteration_bounds = array<i64: 1>, scalar_prefetch = 0 : i64, scratch_operands = 0 : i64, tpu.core_type = #tpu.core_type<tc>, window_params = [{transform_indices = @transform_0, window_bounds = array<i64: 2, 400>}, {pipeline_mode = #tpu.pipeline_mode<synchronous>, transform_indices = @transform_1, window_bounds = array<i64: 400, 128>}, {pipeline_mode = #tpu.pipeline_mode<synchronous>, transform_indices = @transform_2, window_bounds = array<i64: 1, 128>}, {pipeline_mode = #tpu.pipeline_mode<synchronous>, transform_indices = @transform_3, window_bounds = array<i64: 128, 128>}, {pipeline_mode = #tpu.pipeline_mode<synchronous>, transform_indices = @transform_4, window_bounds = array<i64: 1, 128>}, {pipeline_mode = #tpu.pipeline_mode<synchronous>, transform_indices = @transform_5, window_bounds = array<i64: 128, 128>}, {pipeline_mode = #tpu.pipeline_mode<synchronous>, transform_indices = @transform_6, window_bounds = array<i64: 1, 128>}, {transform_indices = @transform_7, window_bounds = array<i64: 2, 128>}]} {
    %c0 = arith.constant 0 : index
    %c0_0 = arith.constant 0 : index
    %0 = vector.load %arg1[%c0, %c0_0] : memref<2x400xbf16, #tpu.memory_space<vmem>>, vector<2x400xbf16>
    %c0_1 = arith.constant 0 : index
    %c0_2 = arith.constant 0 : index
    %1 = vector.load %arg2[%c0_1, %c0_2] : memref<400x128xbf16, #tpu.memory_space<vmem>>, vector<400x128xbf16>
    %cst = arith.constant dense<0.000000e+00> : vector<2x128xf32>
    %2 = tpu.matmul %0, %1, %cst {dimension_numbers = #tpu.dot_dimension_numbers<[1], [0], [0], [1], [0, 0, 1, 1], [], []>} : vector<2x400xbf16>, vector<400x128xbf16>, vector<2x128xf32> -> vector<2x128xf32>
    %c0_3 = arith.constant 0 : index
    %c0_4 = arith.constant 0 : index
    %3 = vector.load %arg3[%c0_3, %c0_4] : memref<1x128xf32, #tpu.memory_space<vmem>>, vector<1x128xf32>
    %4 = vector.broadcast %3 : vector<1x128xf32> to vector<2x128xf32>
    %5 = arith.addf %2, %4 : vector<2x128xf32>
    %cst_5 = arith.constant 0.000000e+00 : f32
    %6 = vector.broadcast %cst_5 : f32 to vector<2x128xf32>
    %7 = arith.maximumf %5, %6 : vector<2x128xf32>
    %8 = arith.truncf %7 : vector<2x128xf32> to vector<2x128xbf16>
    %c0_6 = arith.constant 0 : index
    %c0_7 = arith.constant 0 : index
    %9 = vector.load %arg4[%c0_6, %c0_7] : memref<128x128xbf16, #tpu.memory_space<vmem>>, vector<128x128xbf16>
    %cst_8 = arith.constant dense<0.000000e+00> : vector<2x128xf32>
    %10 = tpu.matmul %8, %9, %cst_8 {dimension_numbers = #tpu.dot_dimension_numbers<[1], [0], [0], [1], [0, 0, 1, 1], [], []>} : vector<2x128xbf16>, vector<128x128xbf16>, vector<2x128xf32> -> vector<2x128xf32>
    %c0_9 = arith.constant 0 : index
    %c0_10 = arith.constant 0 : index
    %11 = vector.load %arg5[%c0_9, %c0_10] : memref<1x128xf32, #tpu.memory_space<vmem>>, vector<1x128xf32>
    %12 = vector.broadcast %11 : vector<1x128xf32> to vector<2x128xf32>
    %13 = arith.addf %10, %12 : vector<2x128xf32>
    %cst_11 = arith.constant 0.000000e+00 : f32
    %14 = vector.broadcast %cst_11 : f32 to vector<2x128xf32>
    %15 = arith.maximumf %13, %14 : vector<2x128xf32>
    %16 = arith.truncf %15 : vector<2x128xf32> to vector<2x128xbf16>
    %c0_12 = arith.constant 0 : index
    %c0_13 = arith.constant 0 : index
    %17 = vector.load %arg6[%c0_12, %c0_13] : memref<128x128xbf16, #tpu.memory_space<vmem>>, vector<128x128xbf16>
    %cst_14 = arith.constant dense<0.000000e+00> : vector<2x128xf32>
    %18 = tpu.matmul %16, %17, %cst_14 {dimension_numbers = #tpu.dot_dimension_numbers<[1], [0], [0], [1], [0, 0, 1, 1], [], []>} : vector<2x128xbf16>, vector<128x128xbf16>, vector<2x128xf32> -> vector<2x128xf32>
    %c0_15 = arith.constant 0 : index
    %c0_16 = arith.constant 0 : index
    %19 = vector.load %arg7[%c0_15, %c0_16] : memref<1x128xf32, #tpu.memory_space<vmem>>, vector<1x128xf32>
    %20 = vector.broadcast %19 : vector<1x128xf32> to vector<2x128xf32>
    %21 = arith.addf %18, %20 : vector<2x128xf32>
    %c0_17 = arith.constant 0 : index
    %c0_18 = arith.constant 0 : index
    %22 = vector.load %arg8[%c0_17, %c0_18] : memref<2x128xf32, #tpu.memory_space<vmem>>, vector<2x128xf32>
    tpu.vector_store %arg8[%c0_17, %c0_18], %21 {strides = array<i32>} : memref<2x128xf32, #tpu.memory_space<vmem>>, vector<2x128xf32>,
    return
  }
  func.func @transform_0(%arg0: i32) -> (i32, i32) {
    %c0_i32 = arith.constant 0 : i32
    %c0_i32_0 = arith.constant 0 : i32
    return %arg0, %c0_i32 : i32, i32
  }
  func.func @transform_1(%arg0: i32) -> (i32, i32) {
    %c0_i32 = arith.constant 0 : i32
    %c0_i32_0 = arith.constant 0 : i32
    %c0_i32_1 = arith.constant 0 : i32
    return %c0_i32, %c0_i32_0 : i32, i32
  }
  func.func @transform_2(%arg0: i32) -> (i32, i32) {
    %c0_i32 = arith.constant 0 : i32
    %c0_i32_0 = arith.constant 0 : i32
    %c0_i32_1 = arith.constant 0 : i32
    return %c0_i32, %c0_i32_0 : i32, i32
  }
  func.func @transform_3(%arg0: i32) -> (i32, i32) {
    %c0_i32 = arith.constant 0 : i32
    %c0_i32_0 = arith.constant 0 : i32
    %c0_i32_1 = arith.constant 0 : i32
    return %c0_i32, %c0_i32_0 : i32, i32
  }
  func.func @transform_4(%arg0: i32) -> (i32, i32) {
    %c0_i32 = arith.constant 0 : i32
    %c0_i32_0 = arith.constant 0 : i32
    %c0_i32_1 = arith.constant 0 : i32
    return %c0_i32, %c0_i32_0 : i32, i32
  }
  func.func @transform_5(%arg0: i32) -> (i32, i32) {
    %c0_i32 = arith.constant 0 : i32
    %c0_i32_0 = arith.constant 0 : i32
    %c0_i32_1 = arith.constant 0 : i32
    return %c0_i32, %c0_i32_0 : i32, i32
  }
  func.func @transform_6(%arg0: i32) -> (i32, i32) {
    %c0_i32 = arith.constant 0 : i32
    %c0_i32_0 = arith.constant 0 : i32
    %c0_i32_1 = arith.constant 0 : i32
    return %c0_i32, %c0_i32_0 : i32, i32
  }
  func.func @transform_7(%arg0: i32) -> (i32, i32) {
    %c0_i32 = arith.constant 0 : i32
    %c0_i32_0 = arith.constant 0 : i32
    return %arg0, %c0_i32 : i32, i32
  }
}

</mosaic_0001>

<llo_original>
// kernel: task_icons_net_forward.3
$region0: #{task_icons_net_forward.3}
  #allocation0 [shape = 'u32[]', space=smem, size = 0x4, offset = 0x4, fixed_abs, tag = 'smem constant byte address 0x4 - core index']
  #allocation1 [shape = 'u32[144,128]{1,0:T(1,128)}', space=vmem, size = 0x12000, scoped, tag = 'internal scratch']
  %s0 = inlined_call_operand.vmem [shape: bf16[4,25,392], index: 0, kind: input, shape index: {}]
  %s1 = inlined_call_operand.vmem [shape: bf16[6,25], index: 1, kind: input, shape index: {}]
  %s2 = inlined_call_operand.vmem [shape: f32[6,1], index: 2, kind: input, shape index: {}]
  %s3 = inlined_call_operand.vmem [shape: bf16[6,392], index: 3, kind: output, shape index: {}]
  %s4 = sld [smem:[#allocation0]]
  $region22: #{task_icons_net_forward.3} parent=0
    _
  %s6 = ssub.s32 1, %s4
  %s7 = scalar_select 0, %s6, %s4
  // Predicated region
  $region2: #{task_icons_net_forward.3} parent=0 // pred_check
    _
  $region3: #{task_icons_net_forward.3} parent=0 // pred_check_branch
    %9 = sbr.rel (0) target = $region5
  $region4: #{task_icons_net_forward.3} parent=0 // pred_region
    _
  $region5: #{task_icons_net_forward.3} parent=0 // pred_fallthru
    _
  // Predicated region
  $region6: #{task_icons_net_forward.3} parent=0 // pred_check
    _
  $region7: #{task_icons_net_forward.3} parent=0 // pred_check_branch
    %11 = sbr.rel (0) target = $region9
  $region8: #{task_icons_net_forward.3} parent=0 // pred_region
    _
  $region9: #{task_icons_net_forward.3} parent=0 // pred_fallthru
    _
  // Predicated region
  $region10: #{task_icons_net_forward.3} parent=0 // pred_check
    _
  $region11: #{task_icons_net_forward.3} parent=0 // pred_check_branch
    %13 = sbr.rel (0) target = $region13
  $region12: #{task_icons_net_forward.3} parent=0 // pred_region
    _
  $region13: #{task_icons_net_forward.3} parent=0 // pred_fallthru
    _
  %v15 = vld [vmem:[%s2] sm:$0x3f]
  %v16 = vld [vmem:[%s1] sm:$0x7]
  %v17 = vld [vmem:[%s0] sm:$0xff]
  %v18 = vld [vmem:[%s0 + $0x8] sm:$0xff]
  %v19 = vld [vmem:[%s0 + $0x10] sm:$0xff]
  %v20 = vld [vmem:[%s0 + $0x18] sm:$0xff]
  %v21 = vld [vmem:[%s0 + $0x20] sm:$0xff]
  %v22 = vld [vmem:[%s0 + $0x28] sm:$0xff]
  %v23 = vld [vmem:[%s0 + $0x30] sm:$0x11]
  %v24 = vld [vmem:[%s0 + $0x38] sm:$0x11]
  %26 = vset.pattern.permute.xlu0 0
  %27 = vperm.xlu0 %26, %v15
  %v28 = vpop.permute.xlu0 %27
  %v38 = vunpack.c.l.b16 %v17
  %v39 = vunpack.c.h.b16 %v17
  %v40 = vunpack.c.l.b16 %v18
  %v41 = vunpack.c.h.b16 %v18
  %v42 = vunpack.c.l.b16 %v19
  %v43 = vunpack.c.h.b16 %v19
  %v44 = vunpack.c.l.b16 %v20
  %v45 = vunpack.c.h.b16 %v20
  %v46 = vunpack.c.l.b16 %v21
  %v47 = vunpack.c.h.b16 %v21
  %v48 = vunpack.c.l.b16 %v22
  %v49 = vunpack.c.h.b16 %v22
  %v50 = vunpack.c.l.b16 %v23
  %v51 = vunpack.c.h.b16 %v23
  %v52 = vunpack.c.l.b16 %v24
  %v53 = vunpack.c.h.b16 %v24
  %v54 = vpack.c.b16 %v42, %v38
  %v55 = vpack.c.b16 %v43, %v39
  %v56 = vpack.c.b16 %v44, %v40
  %v57 = vpack.c.b16 %v45, %v41
  %v58 = vpack.c.b16 %v50, %v46
  %v59 = vpack.c.b16 %v51, %v47
  %v60 = vpack.c.b16 %v52, %v48
  %v61 = vpack.c.b16 %v53, %v49
  %vm66 = vcmask 203776
  %v68 = vsel %vm66, %v16, 0
  %vm70 = vcmask 1043456
  %vm71 = vcmask 1044480
  %v72 = vsel %vm70, 4294967295, 65535
  %v73 = vsel %vm71, %v72, 0
  %v75 = vand.u32 %v58, %v73
  %v78 = vand.u32 %v59, %v73
  %v81 = vand.u32 %v60, %v73
  %v84 = vand.u32 %v61, %v73
  %86 = vmatprep.subr.bf16.mxu0 0
  %87 = vmatpush1.bf16.msra.mxu0 0
  %88 = vmatprep.subr.bf16.mxu0 0
  %89 = vmatpush1.bf16.msra.mxu0 0
  %90 = vmatprep.subr.bf16.mxu0 0
  %91 = vmatpush1.bf16.msra.mxu0 0
  %92 = vmatprep.subr.bf16.mxu0 0
  %93 = vmatpush1.bf16.msra.mxu0 0
  %94 = vmatprep.subr.bf16.mxu0 0
  %95 = vmatpush1.bf16.msra.mxu0 0
  %96 = vmatprep.subr.bf16.mxu0 0
  %97 = vmatpush1.bf16.msra.mxu0 0
  %98 = vmatprep.subr.bf16.mxu0 %v78
  %99 = vmatpush1.bf16.msra.mxu0 %v75
  %100 = vmatprep.subr.bf16.mxu0 %v55
  %101 = vmatpush1.bf16.msra.mxu0 %v54
  %102 = vmatprep.subr.bf16.mxu0 0
  %103 = vmatpush2.bf16.msra.mxu0 0
  %104 = vmatprep.subr.bf16.mxu0 0
  %105 = vmatpush2.bf16.msra.mxu0 0
  %106 = vmatprep.subr.bf16.mxu0 0
  %107 = vmatpush2.bf16.msra.mxu0 0
  %108 = vmatprep.subr.bf16.mxu0 0
  %109 = vmatpush2.bf16.msra.mxu0 0
  %110 = vmatprep.subr.bf16.mxu0 0
  %111 = vmatpush2.bf16.msra.mxu0 0
  %112 = vmatprep.subr.bf16.mxu0 0
  %113 = vmatpush2.bf16.msra.mxu0 0
  %114 = vmatprep.subr.bf16.mxu0 0
  %115 = vmatpush2.bf16.msra.mxu0 0
  %116 = vmatprep.subr.bf16.mxu0 0
  %117 = vmatpush2.bf16.msra.mxu0 0
  %118 = vmatprep.mubr.bf16.mxu0 0
  %119 = vmatmul.mubr.bf16.gmra.mxu0 %v68
  %v120 = vpop.f32.mrf.mxu0
  %v121 = vadd.f32 %v28, %v120
  %v122 = vpop.f32.mrf.mxu0
  %v123 = vadd.f32 %v28, %v122
  %v124 = vpop.f32.mrf.mxu0
  %v125 = vpop.f32.mrf.mxu0
  %126 = vdwg.mxu0
  %127 = vmatprep.subr.bf16.mxu0 0
  %128 = vmatpush1.bf16.msra.mxu0 0
  %129 = vmatprep.subr.bf16.mxu0 0
  %130 = vmatpush1.bf16.msra.mxu0 0
  %131 = vmatprep.subr.bf16.mxu0 0
  %132 = vmatpush1.bf16.msra.mxu0 0
  %133 = vmatprep.subr.bf16.mxu0 0
  %134 = vmatpush1.bf16.msra.mxu0 0
  %135 = vmatprep.subr.bf16.mxu0 0
  %136 = vmatpush1.bf16.msra.mxu0 0
  %137 = vmatprep.subr.bf16.mxu0 0
  %138 = vmatpush1.bf16.msra.mxu0 0
  %139 = vmatprep.subr.bf16.mxu0 %v84
  %140 = vmatpush1.bf16.msra.mxu0 %v81
  %141 = vmatprep.subr.bf16.mxu0 %v57
  %142 = vmatpush1.bf16.msra.mxu0 %v56
  %143 = vmatprep.subr.bf16.mxu0 0
  %144 = vmatpush2.bf16.msra.mxu0 0
  %145 = vmatprep.subr.bf16.mxu0 0
  %146 = vmatpush2.bf16.msra.mxu0 0
  %147 = vmatprep.subr.bf16.mxu0 0
  %148 = vmatpush2.bf16.msra.mxu0 0
  %149 = vmatprep.subr.bf16.mxu0 0
  %150 = vmatpush2.bf16.msra.mxu0 0
  %151 = vmatprep.subr.bf16.mxu0 0
  %152 = vmatpush2.bf16.msra.mxu0 0
  %153 = vmatprep.subr.bf16.mxu0 0
  %154 = vmatpush2.bf16.msra.mxu0 0
  %155 = vmatprep.subr.bf16.mxu0 0
  %156 = vmatpush2.bf16.msra.mxu0 0
  %157 = vmatprep.subr.bf16.mxu0 0
  %158 = vmatpush2.bf16.msra.mxu0 0
  %159 = vmatprep.mubr.bf16.mxu0 0
  %160 = vmatmul.mubr.bf16.gmra.mxu0 %v68
  %v161 = vpop.f32.mrf.mxu0
  %v162 = vadd.f32 %v28, %v161
  %v163 = vpop.f32.mrf.mxu0
  %v164 = vadd.f32 %v28, %v163
  %v165 = vpop.f32.mrf.mxu0
  %v166 = vpop.f32.mrf.mxu0
  %167 = vdwg.mxu0
  %s168 = scalar_lea.vmem %s0, 64
  %v169 = vld [vmem:[%s168] sm:$0xff]
  %v170 = vld [vmem:[%s168 + $0x8] sm:$0xff]
  %v171 = vld [vmem:[%s168 + $0x10] sm:$0xff]
  %v172 = vld [vmem:[%s168 + $0x18] sm:$0xff]
  %v173 = vld [vmem:[%s168 + $0x20] sm:$0xff]
  %v174 = vld [vmem:[%s168 + $0x28] sm:$0xff]
  %v175 = vld [vmem:[%s168 + $0x30] sm:$0x11]
  %v176 = vld [vmem:[%s168 + $0x38] sm:$0x11]
  %v185 = vunpack.c.l.b16 %v169
  %v186 = vunpack.c.h.b16 %v169
  %v187 = vunpack.c.l.b16 %v170
  %v188 = vunpack.c.h.b16 %v170
  %v189 = vunpack.c.l.b16 %v171
  %v190 = vunpack.c.h.b16 %v171
  %v191 = vunpack.c.l.b16 %v172
  %v192 = vunpack.c.h.b16 %v172
  %v193 = vunpack.c.l.b16 %v173
  %v194 = vunpack.c.h.b16 %v173
  %v195 = vunpack.c.l.b16 %v174
  %v196 = vunpack.c.h.b16 %v174
  %v197 = vunpack.c.l.b16 %v175
  %v198 = vunpack.c.h.b16 %v175
  %v199 = vunpack.c.l.b16 %v176
  %v200 = vunpack.c.h.b16 %v176
  %v201 = vpack.c.b16 %v189, %v185
  %v202 = vpack.c.b16 %v190, %v186
  %v203 = vpack.c.b16 %v191, %v187
  %v204 = vpack.c.b16 %v192, %v188
  %v205 = vpack.c.b16 %v197, %v193
  %v206 = vpack.c.b16 %v198, %v194
  %v207 = vpack.c.b16 %v199, %v195
  %v208 = vpack.c.b16 %v200, %v196
  %v214 = vand.u32 %v205, %v73
  %v217 = vand.u32 %v206, %v73
  %v220 = vand.u32 %v207, %v73
  %v223 = vand.u32 %v208, %v73
  %225 = vmatprep.subr.bf16.mxu0 0
  %226 = vmatpush1.bf16.msra.mxu0 0
  %227 = vmatprep.subr.bf16.mxu0 0
  %228 = vmatpush1.bf16.msra.mxu0 0
  %229 = vmatprep.subr.bf16.mxu0 0
  %230 = vmatpush1.bf16.msra.mxu0 0
  %231 = vmatprep.subr.bf16.mxu0 0
  %232 = vmatpush1.bf16.msra.mxu0 0
  %233 = vmatprep.subr.bf16.mxu0 0
  %234 = vmatpush1.bf16.msra.mxu0 0
  %235 = vmatprep.subr.bf16.mxu0 0
  %236 = vmatpush1.bf16.msra.mxu0 0
  %237 = vmatprep.subr.bf16.mxu0 %v217
  %238 = vmatpush1.bf16.msra.mxu0 %v214
  %239 = vmatprep.subr.bf16.mxu0 %v202
  %240 = vmatpush1.bf16.msra.mxu0 %v201
  %241 = vmatprep.subr.bf16.mxu0 0
  %242 = vmatpush2.bf16.msra.mxu0 0
  %243 = vmatprep.subr.bf16.mxu0 0
  %244 = vmatpush2.bf16.msra.mxu0 0
  %245 = vmatprep.subr.bf16.mxu0 0
  %246 = vmatpush2.bf16.msra.mxu0 0
  %247 = vmatprep.subr.bf16.mxu0 0
  %248 = vmatpush2.bf16.msra.mxu0 0
  %249 = vmatprep.subr.bf16.mxu0 0
  %250 = vmatpush2.bf16.msra.mxu0 0
  %251 = vmatprep.subr.bf16.mxu0 0
  %252 = vmatpush2.bf16.msra.mxu0 0
  %253 = vmatprep.subr.bf16.mxu0 0
  %254 = vmatpush2.bf16.msra.mxu0 0
  %255 = vmatprep.subr.bf16.mxu0 0
  %256 = vmatpush2.bf16.msra.mxu0 0
  %257 = vmatprep.mubr.bf16.mxu0 0
  %258 = vmatmul.mubr.bf16.gmra.mxu0 %v68
  %v259 = vpop.f32.mrf.mxu0
  %v260 = vadd.f32 %v28, %v259
  %v261 = vpop.f32.mrf.mxu0
  %v262 = vadd.f32 %v28, %v261
  %v263 = vpop.f32.mrf.mxu0
  %v264 = vpop.f32.mrf.mxu0
  %265 = vdwg.mxu0
  %266 = vmatprep.subr.bf16.mxu0 0
  %267 = vmatpush1.bf16.msra.mxu0 0
  %268 = vmatprep.subr.bf16.mxu0 0
  %269 = vmatpush1.bf16.msra.mxu0 0
  %270 = vmatprep.subr.bf16.mxu0 0
  %271 = vmatpush1.bf16.msra.mxu0 0
  %272 = vmatprep.subr.bf16.mxu0 0
  %273 = vmatpush1.bf16.msra.mxu0 0
  %274 = vmatprep.subr.bf16.mxu0 0
  %275 = vmatpush1.bf16.msra.mxu0 0
  %276 = vmatprep.subr.bf16.mxu0 0
  %277 = vmatpush1.bf16.msra.mxu0 0
  %278 = vmatprep.subr.bf16.mxu0 %v223
  %279 = vmatpush1.bf16.msra.mxu0 %v220
  %280 = vmatprep.subr.bf16.mxu0 %v204
  %281 = vmatpush1.bf16.msra.mxu0 %v203
  %282 = vmatprep.subr.bf16.mxu0 0
  %283 = vmatpush2.bf16.msra.mxu0 0
  %284 = vmatprep.subr.bf16.mxu0 0
  %285 = vmatpush2.bf16.msra.mxu0 0
  %286 = vmatprep.subr.bf16.mxu0 0
  %287 = vmatpush2.bf16.msra.mxu0 0
  %288 = vmatprep.subr.bf16.mxu0 0
  %289 = vmatpush2.bf16.msra.mxu0 0
  %290 = vmatprep.subr.bf16.mxu0 0
  %291 = vmatpush2.bf16.msra.mxu0 0
  %292 = vmatprep.subr.bf16.mxu0 0
  %293 = vmatpush2.bf16.msra.mxu0 0
  %294 = vmatprep.subr.bf16.mxu0 0
  %295 = vmatpush2.bf16.msra.mxu0 0
  %296 = vmatprep.subr.bf16.mxu0 0
  %297 = vmatpush2.bf16.msra.mxu0 0
  %298 = vmatprep.mubr.bf16.mxu0 0
  %299 = vmatmul.mubr.bf16.gmra.mxu0 %v68
  %v300 = vpop.f32.mrf.mxu0
  %v301 = vadd.f32 %v28, %v300
  %v302 = vpop.f32.mrf.mxu0
  %v303 = vadd.f32 %v28, %v302
  %v304 = vpop.f32.mrf.mxu0
  %v305 = vpop.f32.mrf.mxu0
  %306 = vdwg.mxu0
  %v307 = vmax.f32 %v121, %v260
  %v308 = vmax.f32 %v123, %v262
  %v309 = vmax.f32 %v162, %v301
  %v310 = vmax.f32 %v164, %v303
  %s311 = scalar_lea.vmem %s0, 128
  %v312 = vld [vmem:[%s311] sm:$0xff]
  %v313 = vld [vmem:[%s311 + $0x8] sm:$0xff]
  %v314 = vld [vmem:[%s311 + $0x10] sm:$0xff]
  %v315 = vld [vmem:[%s311 + $0x18] sm:$0xff]
  %v316 = vld [vmem:[%s311 + $0x20] sm:$0xff]
  %v317 = vld [vmem:[%s311 + $0x28] sm:$0xff]
  %v318 = vld [vmem:[%s311 + $0x30] sm:$0x11]
  %v319 = vld [vmem:[%s311 + $0x38] sm:$0x11]
  %v328 = vunpack.c.l.b16 %v312
  %v329 = vunpack.c.h.b16 %v312
  %v330 = vunpack.c.l.b16 %v313
  %v331 = vunpack.c.h.b16 %v313
  %v332 = vunpack.c.l.b16 %v314
  %v333 = vunpack.c.h.b16 %v314
  %v334 = vunpack.c.l.b16 %v315
  %v335 = vunpack.c.h.b16 %v315
  %v336 = vunpack.c.l.b16 %v316
  %v337 = vunpack.c.h.b16 %v316
  %v338 = vunpack.c.l.b16 %v317
  %v339 = vunpack.c.h.b16 %v317
  %v340 = vunpack.c.l.b16 %v318
  %v341 = vunpack.c.h.b16 %v318
  %v342 = vunpack.c.l.b16 %v319
  %v343 = vunpack.c.h.b16 %v319
  %v344 = vpack.c.b16 %v332, %v328
  %v345 = vpack.c.b16 %v333, %v329
  %v346 = vpack.c.b16 %v334, %v330
  %v347 = vpack.c.b16 %v335, %v331
  %v348 = vpack.c.b16 %v340, %v336
  %v349 = vpack.c.b16 %v341, %v337
  %v350 = vpack.c.b16 %v342, %v338
  %v351 = vpack.c.b16 %v343, %v339
  %v357 = vand.u32 %v348, %v73
  %v360 = vand.u32 %v349, %v73
  %v363 = vand.u32 %v350, %v73
  %v366 = vand.u32 %v351, %v73
  %368 = vmatprep.subr.bf16.mxu0 0
  %369 = vmatpush1.bf16.msra.mxu0 0
  %370 = vmatprep.subr.bf16.mxu0 0
  %371 = vmatpush1.bf16.msra.mxu0 0
  %372 = vmatprep.subr.bf16.mxu0 0
  %373 = vmatpush1.bf16.msra.mxu0 0
  %374 = vmatprep.subr.bf16.mxu0 0
  %375 = vmatpush1.bf16.msra.mxu0 0
  %376 = vmatprep.subr.bf16.mxu0 0
  %377 = vmatpush1.bf16.msra.mxu0 0
  %378 = vmatprep.subr.bf16.mxu0 0
  %379 = vmatpush1.bf16.msra.mxu0 0
  %380 = vmatprep.subr.bf16.mxu0 %v360
  %381 = vmatpush1.bf16.msra.mxu0 %v357
  %382 = vmatprep.subr.bf16.mxu0 %v345
  %383 = vmatpush1.bf16.msra.mxu0 %v344
  %384 = vmatprep.subr.bf16.mxu0 0
  %385 = vmatpush2.bf16.msra.mxu0 0
  %386 = vmatprep.subr.bf16.mxu0 0
  %387 = vmatpush2.bf16.msra.mxu0 0
  %388 = vmatprep.subr.bf16.mxu0 0
  %389 = vmatpush2.bf16.msra.mxu0 0
  %390 = vmatprep.subr.bf16.mxu0 0
  %391 = vmatpush2.bf16.msra.mxu0 0
  %392 = vmatprep.subr.bf16.mxu0 0
  %393 = vmatpush2.bf16.msra.mxu0 0
  %394 = vmatprep.subr.bf16.mxu0 0
  %395 = vmatpush2.bf16.msra.mxu0 0
  %396 = vmatprep.subr.bf16.mxu0 0
  %397 = vmatpush2.bf16.msra.mxu0 0
  %398 = vmatprep.subr.bf16.mxu0 0
  %399 = vmatpush2.bf16.msra.mxu0 0
  %400 = vmatprep.mubr.bf16.mxu0 0
  %401 = vmatmul.mubr.bf16.gmra.mxu0 %v68
  %v402 = vpop.f32.mrf.mxu0
  %v403 = vadd.f32 %v28, %v402
  %v404 = vpop.f32.mrf.mxu0
  %v405 = vadd.f32 %v28, %v404
  %v406 = vpop.f32.mrf.mxu0
  %v407 = vpop.f32.mrf.mxu0
  %408 = vdwg.mxu0
  %409 = vmatprep.subr.bf16.mxu0 0
  %410 = vmatpush1.bf16.msra.mxu0 0
  %411 = vmatprep.subr.bf16.mxu0 0
  %412 = vmatpush1.bf16.msra.mxu0 0
  %413 = vmatprep.subr.bf16.mxu0 0
  %414 = vmatpush1.bf16.msra.mxu0 0
  %415 = vmatprep.subr.bf16.mxu0 0
  %416 = vmatpush1.bf16.msra.mxu0 0
  %417 = vmatprep.subr.bf16.mxu0 0
  %418 = vmatpush1.bf16.msra.mxu0 0
  %419 = vmatprep.subr.bf16.mxu0 0
  %420 = vmatpush1.bf16.msra.mxu0 0
  %421 = vmatprep.subr.bf16.mxu0 %v366
  %422 = vmatpush1.bf16.msra.mxu0 %v363
  %423 = vmatprep.subr.bf16.mxu0 %v347
  %424 = vmatpush1.bf16.msra.mxu0 %v346
  %425 = vmatprep.subr.bf16.mxu0 0
  %426 = vmatpush2.bf16.msra.mxu0 0
  %427 = vmatprep.subr.bf16.mxu0 0
  %428 = vmatpush2.bf16.msra.mxu0 0
  %429 = vmatprep.subr.bf16.mxu0 0
  %430 = vmatpush2.bf16.msra.mxu0 0
  %431 = vmatprep.subr.bf16.mxu0 0
  %432 = vmatpush2.bf16.msra.mxu0 0
  %433 = vmatprep.subr.bf16.mxu0 0
  %434 = vmatpush2.bf16.msra.mxu0 0
  %435 = vmatprep.subr.bf16.mxu0 0
  %436 = vmatpush2.bf16.msra.mxu0 0
  %437 = vmatprep.subr.bf16.mxu0 0
  %438 = vmatpush2.bf16.msra.mxu0 0
  %439 = vmatprep.subr.bf16.mxu0 0
  %440 = vmatpush2.bf16.msra.mxu0 0
  %441 = vmatprep.mubr.bf16.mxu0 0
  %442 = vmatmul.mubr.bf16.gmra.mxu0 %v68
  %v443 = vpop.f32.mrf.mxu0
  %v444 = vadd.f32 %v28, %v443
  %v445 = vpop.f32.mrf.mxu0
  %v446 = vadd.f32 %v28, %v445
  %v447 = vpop.f32.mrf.mxu0
  %v448 = vpop.f32.mrf.mxu0
  %449 = vdwg.mxu0
  %s450 = scalar_lea.vmem %s0, 192
  %v451 = vld [vmem:[%s450] sm:$0xff]
  %v452 = vld [vmem:[%s450 + $0x8] sm:$0xff]
  %v453 = vld [vmem:[%s450 + $0x10] sm:$0xff]
  %v454 = vld [vmem:[%s450 + $0x18] sm:$0xff]
  %v455 = vld [vmem:[%s450 + $0x20] sm:$0xff]
  %v456 = vld [vmem:[%s450 + $0x28] sm:$0xff]
  %v457 = vld [vmem:[%s450 + $0x30] sm:$0x11]
  %v458 = vld [vmem:[%s450 + $0x38] sm:$0x11]
  %v467 = vunpack.c.l.b16 %v451
  %v468 = vunpack.c.h.b16 %v451
  %v469 = vunpack.c.l.b16 %v452
  %v470 = vunpack.c.h.b16 %v452
  %v471 = vunpack.c.l.b16 %v453
  %v472 = vunpack.c.h.b16 %v453
  %v473 = vunpack.c.l.b16 %v454
  %v474 = vunpack.c.h.b16 %v454
  %v475 = vunpack.c.l.b16 %v455
  %v476 = vunpack.c.h.b16 %v455
  %v477 = vunpack.c.l.b16 %v456
  %v478 = vunpack.c.h.b16 %v456
  %v479 = vunpack.c.l.b16 %v457
  %v480 = vunpack.c.h.b16 %v457
  %v481 = vunpack.c.l.b16 %v458
  %v482 = vunpack.c.h.b16 %v458
  %v483 = vpack.c.b16 %v471, %v467
  %v484 = vpack.c.b16 %v472, %v468
  %v485 = vpack.c.b16 %v473, %v469
  %v486 = vpack.c.b16 %v474, %v470
  %v487 = vpack.c.b16 %v479, %v475
  %v488 = vpack.c.b16 %v480, %v476
  %v489 = vpack.c.b16 %v481, %v477
  %v490 = vpack.c.b16 %v482, %v478
  %v496 = vand.u32 %v487, %v73
  %v499 = vand.u32 %v488, %v73
  %v502 = vand.u32 %v489, %v73
  %v505 = vand.u32 %v490, %v73
  %507 = vmatprep.subr.bf16.mxu0 0
  %508 = vmatpush1.bf16.msra.mxu0 0
  %509 = vmatprep.subr.bf16.mxu0 0
  %510 = vmatpush1.bf16.msra.mxu0 0
  %511 = vmatprep.subr.bf16.mxu0 0
  %512 = vmatpush1.bf16.msra.mxu0 0
  %513 = vmatprep.subr.bf16.mxu0 0
  %514 = vmatpush1.bf16.msra.mxu0 0
  %515 = vmatprep.subr.bf16.mxu0 0
  %516 = vmatpush1.bf16.msra.mxu0 0
  %517 = vmatprep.subr.bf16.mxu0 0
  %518 = vmatpush1.bf16.msra.mxu0 0
  %519 = vmatprep.subr.bf16.mxu0 %v499
  %520 = vmatpush1.bf16.msra.mxu0 %v496
  %521 = vmatprep.subr.bf16.mxu0 %v484
  %522 = vmatpush1.bf16.msra.mxu0 %v483
  %523 = vmatprep.subr.bf16.mxu0 0
  %524 = vmatpush2.bf16.msra.mxu0 0
  %525 = vmatprep.subr.bf16.mxu0 0
  %526 = vmatpush2.bf16.msra.mxu0 0
  %527 = vmatprep.subr.bf16.mxu0 0
  %528 = vmatpush2.bf16.msra.mxu0 0
  %529 = vmatprep.subr.bf16.mxu0 0
  %530 = vmatpush2.bf16.msra.mxu0 0
  %531 = vmatprep.subr.bf16.mxu0 0
  %532 = vmatpush2.bf16.msra.mxu0 0
  %533 = vmatprep.subr.bf16.mxu0 0
  %534 = vmatpush2.bf16.msra.mxu0 0
  %535 = vmatprep.subr.bf16.mxu0 0
  %536 = vmatpush2.bf16.msra.mxu0 0
  %537 = vmatprep.subr.bf16.mxu0 0
  %538 = vmatpush2.bf16.msra.mxu0 0
  %539 = vmatprep.mubr.bf16.mxu0 0
  %540 = vmatmul.mubr.bf16.gmra.mxu0 %v68
  %v541 = vpop.f32.mrf.mxu0
  %v542 = vadd.f32 %v28, %v541
  %v543 = vpop.f32.mrf.mxu0
  %v544 = vadd.f32 %v28, %v543
  %v545 = vpop.f32.mrf.mxu0
  %v546 = vpop.f32.mrf.mxu0
  %547 = vdwg.mxu0
  %548 = vmatprep.subr.bf16.mxu0 0
  %549 = vmatpush1.bf16.msra.mxu0 0
  %550 = vmatprep.subr.bf16.mxu0 0
  %551 = vmatpush1.bf16.msra.mxu0 0
  %552 = vmatprep.subr.bf16.mxu0 0
  %553 = vmatpush1.bf16.msra.mxu0 0
  %554 = vmatprep.subr.bf16.mxu0 0
  %555 = vmatpush1.bf16.msra.mxu0 0
  %556 = vmatprep.subr.bf16.mxu0 0
  %557 = vmatpush1.bf16.msra.mxu0 0
  %558 = vmatprep.subr.bf16.mxu0 0
  %559 = vmatpush1.bf16.msra.mxu0 0
  %560 = vmatprep.subr.bf16.mxu0 %v505
  %561 = vmatpush1.bf16.msra.mxu0 %v502
  %562 = vmatprep.subr.bf16.mxu0 %v486
  %563 = vmatpush1.bf16.msra.mxu0 %v485
  %564 = vmatprep.subr.bf16.mxu0 0
  %565 = vmatpush2.bf16.msra.mxu0 0
  %566 = vmatprep.subr.bf16.mxu0 0
  %567 = vmatpush2.bf16.msra.mxu0 0
  %568 = vmatprep.subr.bf16.mxu0 0
  %569 = vmatpush2.bf16.msra.mxu0 0
  %570 = vmatprep.subr.bf16.mxu0 0
  %571 = vmatpush2.bf16.msra.mxu0 0
  %572 = vmatprep.subr.bf16.mxu0 0
  %573 = vmatpush2.bf16.msra.mxu0 0
  %574 = vmatprep.subr.bf16.mxu0 0
  %575 = vmatpush2.bf16.msra.mxu0 0
  %576 = vmatprep.subr.bf16.mxu0 0
  %577 = vmatpush2.bf16.msra.mxu0 0
  %578 = vmatprep.subr.bf16.mxu0 0
  %579 = vmatpush2.bf16.msra.mxu0 0
  %580 = vmatprep.mubr.bf16.mxu0 0
  %581 = vmatmul.mubr.bf16.gmra.mxu0 %v68
  %v582 = vpop.f32.mrf.mxu0
  %v583 = vadd.f32 %v28, %v582
  %v584 = vpop.f32.mrf.mxu0
  %v585 = vadd.f32 %v28, %v584
  %v586 = vpop.f32.mrf.mxu0
  %v587 = vpop.f32.mrf.mxu0
  %588 = vdwg.mxu0
  %v589 = vmax.f32 %v403, %v542
  %v590 = vmax.f32 %v405, %v544
  %v591 = vmax.f32 %v444, %v583
  %v592 = vmax.f32 %v446, %v585
  %v593 = vmax.f32 %v307, %v589
  %v594 = vmax.f32 %v308, %v590
  %v595 = vmax.f32 %v309, %v591
  %v596 = vmax.f32 %v310, %v592
  %v597 = vmax.f32 %v593, 0.0
  %v598 = vmax.f32 %v594, 0.0
  %v599 = vmax.f32 %v595, 0.0
  %v600 = vmax.f32 %v596, 0.0
  %v601 = vpack.c.bf16 %v597, %v597
  %v602 = vpack.c.bf16 %v598, %v598
  %v603 = vpack.c.bf16 %v599, %v599
  %v604 = vpack.c.bf16 %v600, %v600
  %v609 = vunpack.c.l.b16 %v601
  %v610 = vunpack.c.l.b16 %v602
  %v611 = vunpack.c.l.b16 %v603
  %v612 = vunpack.c.l.b16 %v604
  %v613 = vpack.c.b16 %v610, %v609
  %v614 = vpack.c.b16 %v612, %v611
  %617 = vst [vmem:[%s3] sm:$0x77] %v613
  %vm618 = vcmask 1042432
  %vm619 = vcmask 63492
  %vm620 = vmor %vm619, %vm618
  %621 = vst.msk [vmem:[%s3 + $0x8] sm:$0x77] %vm620, %v614
  // Predicated region
  $region14: #{task_icons_net_forward.3} parent=0 // pred_check
    _
  $region15: #{task_icons_net_forward.3} parent=0 // pred_check_branch
    %623 = sbr.rel (0) target = $region17
  $region16: #{task_icons_net_forward.3} parent=0 // pred_region
    _
  $region17: #{task_icons_net_forward.3} parent=0 // pred_fallthru
    _
  // Predicated region
  $region18: #{task_icons_net_forward.3} parent=0 // pred_check
    _
  $region19: #{task_icons_net_forward.3} parent=0 // pred_check_branch
    %625 = sbr.rel (0) target = $region21
  $region20: #{task_icons_net_forward.3} parent=0 // pred_region
    _
  $region21: #{task_icons_net_forward.3} parent=0 // pred_fallthru
    _

// kernel: task_icons_net_forward.4
$region0: #{task_icons_net_forward.4}
  #allocation0 [shape = 'u32[]', space=smem, size = 0x4, offset = 0x4, fixed_abs, tag = 'smem constant byte address 0x4 - core index']
  #allocation1 [shape = 'u32[144,128]{1,0:T(1,128)}', space=vmem, size = 0x12000, scoped, tag = 'internal scratch']
  %s0 = inlined_call_operand.vmem [shape: bf16[4,150,50], index: 0, kind: input, shape index: {}]
  %s1 = inlined_call_operand.vmem [shape: bf16[16,150], index: 1, kind: input, shape index: {}]
  %s2 = inlined_call_operand.vmem [shape: f32[16,1], index: 2, kind: input, shape index: {}]
  %s3 = inlined_call_operand.vmem [shape: bf16[16,50], index: 3, kind: output, shape index: {}]
  %s4 = sld [smem:[#allocation0]]
  $region22: #{task_icons_net_forward.4} parent=0
    _
  %s6 = ssub.s32 1, %s4
  %s7 = scalar_select 0, %s6, %s4
  // Predicated region
  $region2: #{task_icons_net_forward.4} parent=0 // pred_check
    _
  $region3: #{task_icons_net_forward.4} parent=0 // pred_check_branch
    %9 = sbr.rel (0) target = $region5
  $region4: #{task_icons_net_forward.4} parent=0 // pred_region
    _
  $region5: #{task_icons_net_forward.4} parent=0 // pred_fallthru
    _
  // Predicated region
  $region6: #{task_icons_net_forward.4} parent=0 // pred_check
    _
  $region7: #{task_icons_net_forward.4} parent=0 // pred_check_branch
    %11 = sbr.rel (0) target = $region9
  $region8: #{task_icons_net_forward.4} parent=0 // pred_region
    _
  $region9: #{task_icons_net_forward.4} parent=0 // pred_fallthru
    _
  // Predicated region
  $region10: #{task_icons_net_forward.4} parent=0 // pred_check
    _
  $region11: #{task_icons_net_forward.4} parent=0 // pred_check_branch
    %13 = sbr.rel (0) target = $region13
  $region12: #{task_icons_net_forward.4} parent=0 // pred_region
    _
  $region13: #{task_icons_net_forward.4} parent=0 // pred_fallthru
    _
  %v15 = vld [vmem:[%s2] sm:$0xff]
  %v16 = vld [vmem:[%s2 + $0x8] sm:$0xff]
  %v17 = vld [vmem:[%s1] sm:$0xff]
  %v18 = vld [vmem:[%s1 + $0x8] sm:$0xff]
  %v19 = vld [vmem:[%s0] sm:$0xf]
  %v20 = vld [vmem:[%s0 + $0x4] sm:$0xf]
  %v21 = vld [vmem:[%s0 + $0x8] sm:$0xf]
  %v22 = vld [vmem:[%s0 + $0xc] sm:$0xf]
  %v23 = vld [vmem:[%s0 + $0x10] sm:$0xf]
  %v24 = vld [vmem:[%s0 + $0x14] sm:$0xf]
  %v25 = vld [vmem:[%s0 + $0x18] sm:$0xf]
  %v26 = vld [vmem:[%s0 + $0x1c] sm:$0xf]
  %v27 = vld [vmem:[%s0 + $0x20] sm:$0xf]
  %v28 = vld [vmem:[%s0 + $0x24] sm:$0xf]
  %v29 = vld [vmem:[%s0 + $0x28] sm:$0xf]
  %v30 = vld [vmem:[%s0 + $0x2c] sm:$0xf]
  %v31 = vld [vmem:[%s0 + $0x30] sm:$0xf]
  %v32 = vld [vmem:[%s0 + $0x34] sm:$0xf]
  %v33 = vld [vmem:[%s0 + $0x38] sm:$0xf]
  %v34 = vld [vmem:[%s0 + $0x3c] sm:$0xf]
  %v35 = vld [vmem:[%s0 + $0x40] sm:$0xf]
  %v36 = vld [vmem:[%s0 + $0x44] sm:$0xf]
  %v37 = vld [vmem:[%s0 + $0x48] sm:$0x7]
  %39 = vset.pattern.permute.xlu0 0
  %40 = vperm.xlu0 %39, %v15
  %v41 = vpop.permute.xlu0 %40
  %44 = vset.pattern.permute.xlu0 0
  %45 = vperm.xlu0 %44, %v16
  %v46 = vpop.permute.xlu0 %45
  %v50 = vunpack.c.l.b16 %v17
  %v51 = vunpack.c.h.b16 %v17
  %v52 = vunpack.c.l.b16 %v18
  %v53 = vunpack.c.h.b16 %v18
  %v54 = vpack.c.b16 %v52, %v50
  %v55 = vpack.c.b16 %v53, %v51
  %v76 = vunpack.c.l.b16 %v19
  %v77 = vunpack.c.l.b16 %v20
  %v78 = vunpack.c.l.b16 %v21
  %v79 = vunpack.c.l.b16 %v22
  %v80 = vunpack.c.l.b16 %v23
  %v81 = vunpack.c.l.b16 %v24
  %v82 = vunpack.c.l.b16 %v25
  %v83 = vunpack.c.l.b16 %v26
  %v84 = vunpack.c.l.b16 %v27
  %v85 = vunpack.c.l.b16 %v28
  %v86 = vunpack.c.l.b16 %v29
  %v87 = vunpack.c.l.b16 %v30
  %v88 = vunpack.c.l.b16 %v31
  %v89 = vunpack.c.l.b16 %v32
  %v90 = vunpack.c.l.b16 %v33
  %v91 = vunpack.c.l.b16 %v34
  %v92 = vunpack.c.l.b16 %v35
  %v93 = vunpack.c.l.b16 %v36
  %v94 = vunpack.c.l.b16 %v37
  %v95 = vpack.c.b16 %v77, %v76
  %v96 = vpack.c.b16 %v79, %v78
  %v97 = vpack.c.b16 %v81, %v80
  %v98 = vpack.c.b16 %v83, %v82
  %v99 = vpack.c.b16 %v85, %v84
  %v100 = vpack.c.b16 %v87, %v86
  %v101 = vpack.c.b16 %v89, %v88
  %v102 = vpack.c.b16 %v91, %v90
  %v103 = vpack.c.b16 %v93, %v92
  %v104 = vpack.c.b16 %v94, %v94
  %vm114 = vcmask 179200
  %v116 = vsel %vm114, %v55, 0
  %vm118 = vcmask 1042432
  %v120 = vsel %vm118, %v104, 0
  %122 = vmatprep.subr.bf16.mxu0 0
  %123 = vmatpush1.bf16.msra.mxu0 %v102
  %124 = vmatprep.subr.bf16.mxu0 0
  %125 = vmatpush1.bf16.msra.mxu0 %v101
  %126 = vmatprep.subr.bf16.mxu0 0
  %127 = vmatpush1.bf16.msra.mxu0 %v100
  %128 = vmatprep.subr.bf16.mxu0 0
  %129 = vmatpush1.bf16.msra.mxu0 %v99
  %130 = vmatprep.subr.bf16.mxu0 0
  %131 = vmatpush1.bf16.msra.mxu0 %v98
  %132 = vmatprep.subr.bf16.mxu0 0
  %133 = vmatpush1.bf16.msra.mxu0 %v97
  %134 = vmatprep.subr.bf16.mxu0 0
  %135 = vmatpush1.bf16.msra.mxu0 %v96
  %136 = vmatprep.subr.bf16.mxu0 0
  %137 = vmatpush1.bf16.msra.mxu0 %v95
  %138 = vmatprep.subr.bf16.mxu0 0
  %139 = vmatpush2.bf16.msra.mxu0 0
  %140 = vmatprep.subr.bf16.mxu0 0
  %141 = vmatpush2.bf16.msra.mxu0 0
  %142 = vmatprep.subr.bf16.mxu0 0
  %143 = vmatpush2.bf16.msra.mxu0 0
  %144 = vmatprep.subr.bf16.mxu0 0
  %145 = vmatpush2.bf16.msra.mxu0 0
  %146 = vmatprep.subr.bf16.mxu0 0
  %147 = vmatpush2.bf16.msra.mxu0 0
  %148 = vmatprep.subr.bf16.mxu0 0
  %149 = vmatpush2.bf16.msra.mxu0 0
  %150 = vmatprep.subr.bf16.mxu0 0
  %151 = vmatpush2.bf16.msra.mxu0 %v120
  %152 = vmatprep.subr.bf16.mxu0 0
  %153 = vmatpush2.bf16.msra.mxu0 %v103
  %154 = vmatprep.mubr.bf16.mxu0 %v116
  %155 = vmatmul.mubr.bf16.gmra.mxu0 %v54
  %v156 = vpop.f32.mrf.mxu0
  %v157 = vadd.f32 %v41, %v156
  %v158 = vpop.f32.mrf.mxu0
  %v159 = vpop.f32.mrf.mxu0
  %v160 = vadd.f32 %v46, %v159
  %v161 = vpop.f32.mrf.mxu0
  %162 = vdwg.mxu0
  %s163 = scalar_lea.vmem %s0, 76
  %v164 = vld [vmem:[%s163] sm:$0xf]
  %v165 = vld [vmem:[%s163 + $0x4] sm:$0xf]
  %v166 = vld [vmem:[%s163 + $0x8] sm:$0xf]
  %v167 = vld [vmem:[%s163 + $0xc] sm:$0xf]
  %v168 = vld [vmem:[%s163 + $0x10] sm:$0xf]
  %v169 = vld [vmem:[%s163 + $0x14] sm:$0xf]
  %v170 = vld [vmem:[%s163 + $0x18] sm:$0xf]
  %v171 = vld [vmem:[%s163 + $0x1c] sm:$0xf]
  %v172 = vld [vmem:[%s163 + $0x20] sm:$0xf]
  %v173 = vld [vmem:[%s163 + $0x24] sm:$0xf]
  %v174 = vld [vmem:[%s163 + $0x28] sm:$0xf]
  %v175 = vld [vmem:[%s163 + $0x2c] sm:$0xf]
  %v176 = vld [vmem:[%s163 + $0x30] sm:$0xf]
  %v177 = vld [vmem:[%s163 + $0x34] sm:$0xf]
  %v178 = vld [vmem:[%s163 + $0x38] sm:$0xf]
  %v179 = vld [vmem:[%s163 + $0x3c] sm:$0xf]
  %v180 = vld [vmem:[%s163 + $0x40] sm:$0xf]
  %v181 = vld [vmem:[%s163 + $0x44] sm:$0xf]
  %v182 = vld [vmem:[%s163 + $0x48] sm:$0x7]
  %v202 = vunpack.c.l.b16 %v164
  %v203 = vunpack.c.l.b16 %v165
  %v204 = vunpack.c.l.b16 %v166
  %v205 = vunpack.c.l.b16 %v167
  %v206 = vunpack.c.l.b16 %v168
  %v207 = vunpack.c.l.b16 %v169
  %v208 = vunpack.c.l.b16 %v170
  %v209 = vunpack.c.l.b16 %v171
  %v210 = vunpack.c.l.b16 %v172
  %v211 = vunpack.c.l.b16 %v173
  %v212 = vunpack.c.l.b16 %v174
  %v213 = vunpack.c.l.b16 %v175
  %v214 = vunpack.c.l.b16 %v176
  %v215 = vunpack.c.l.b16 %v177
  %v216 = vunpack.c.l.b16 %v178
  %v217 = vunpack.c.l.b16 %v179
  %v218 = vunpack.c.l.b16 %v180
  %v219 = vunpack.c.l.b16 %v181
  %v220 = vunpack.c.l.b16 %v182
  %v221 = vpack.c.b16 %v203, %v202
  %v222 = vpack.c.b16 %v205, %v204
  %v223 = vpack.c.b16 %v207, %v206
  %v224 = vpack.c.b16 %v209, %v208
  %v225 = vpack.c.b16 %v211, %v210
  %v226 = vpack.c.b16 %v213, %v212
  %v227 = vpack.c.b16 %v215, %v214
  %v228 = vpack.c.b16 %v217, %v216
  %v229 = vpack.c.b16 %v219, %v218
  %v230 = vpack.c.b16 %v220, %v220
  %v241 = vsel %vm118, %v230, 0
  %243 = vmatprep.subr.bf16.mxu0 0
  %244 = vmatpush1.bf16.msra.mxu0 %v228
  %245 = vmatprep.subr.bf16.mxu0 0
  %246 = vmatpush1.bf16.msra.mxu0 %v227
  %247 = vmatprep.subr.bf16.mxu0 0
  %248 = vmatpush1.bf16.msra.mxu0 %v226
  %249 = vmatprep.subr.bf16.mxu0 0
  %250 = vmatpush1.bf16.msra.mxu0 %v225
  %251 = vmatprep.subr.bf16.mxu0 0
  %252 = vmatpush1.bf16.msra.mxu0 %v224
  %253 = vmatprep.subr.bf16.mxu0 0
  %254 = vmatpush1.bf16.msra.mxu0 %v223
  %255 = vmatprep.subr.bf16.mxu0 0
  %256 = vmatpush1.bf16.msra.mxu0 %v222
  %257 = vmatprep.subr.bf16.mxu0 0
  %258 = vmatpush1.bf16.msra.mxu0 %v221
  %259 = vmatprep.subr.bf16.mxu0 0
  %260 = vmatpush2.bf16.msra.mxu0 0
  %261 = vmatprep.subr.bf16.mxu0 0
  %262 = vmatpush2.bf16.msra.mxu0 0
  %263 = vmatprep.subr.bf16.mxu0 0
  %264 = vmatpush2.bf16.msra.mxu0 0
  %265 = vmatprep.subr.bf16.mxu0 0
  %266 = vmatpush2.bf16.msra.mxu0 0
  %267 = vmatprep.subr.bf16.mxu0 0
  %268 = vmatpush2.bf16.msra.mxu0 0
  %269 = vmatprep.subr.bf16.mxu0 0
  %270 = vmatpush2.bf16.msra.mxu0 0
  %271 = vmatprep.subr.bf16.mxu0 0
  %272 = vmatpush2.bf16.msra.mxu0 %v241
  %273 = vmatprep.subr.bf16.mxu0 0
  %274 = vmatpush2.bf16.msra.mxu0 %v229
  %275 = vmatprep.mubr.bf16.mxu0 %v116
  %276 = vmatmul.mubr.bf16.gmra.mxu0 %v54
  %v277 = vpop.f32.mrf.mxu0
  %v278 = vadd.f32 %v41, %v277
  %v279 = vpop.f32.mrf.mxu0
  %v280 = vpop.f32.mrf.mxu0
  %v281 = vadd.f32 %v46, %v280
  %v282 = vpop.f32.mrf.mxu0
  %283 = vdwg.mxu0
  %v284 = vmax.f32 %v157, %v278
  %v285 = vmax.f32 %v160, %v281
  %s286 = scalar_lea.vmem %s0, 152
  %v287 = vld [vmem:[%s286] sm:$0xf]
  %v288 = vld [vmem:[%s286 + $0x4] sm:$0xf]
  %v289 = vld [vmem:[%s286 + $0x8] sm:$0xf]
  %v290 = vld [vmem:[%s286 + $0xc] sm:$0xf]
  %v291 = vld [vmem:[%s286 + $0x10] sm:$0xf]
  %v292 = vld [vmem:[%s286 + $0x14] sm:$0xf]
  %v293 = vld [vmem:[%s286 + $0x18] sm:$0xf]
  %v294 = vld [vmem:[%s286 + $0x1c] sm:$0xf]
  %v295 = vld [vmem:[%s286 + $0x20] sm:$0xf]
  %v296 = vld [vmem:[%s286 + $0x24] sm:$0xf]
  %v297 = vld [vmem:[%s286 + $0x28] sm:$0xf]
  %v298 = vld [vmem:[%s286 + $0x2c] sm:$0xf]
  %v299 = vld [vmem:[%s286 + $0x30] sm:$0xf]
  %v300 = vld [vmem:[%s286 + $0x34] sm:$0xf]
  %v301 = vld [vmem:[%s286 + $0x38] sm:$0xf]
  %v302 = vld [vmem:[%s286 + $0x3c] sm:$0xf]
  %v303 = vld [vmem:[%s286 + $0x40] sm:$0xf]
  %v304 = vld [vmem:[%s286 + $0x44] sm:$0xf]
  %v305 = vld [vmem:[%s286 + $0x48] sm:$0x7]
  %v325 = vunpack.c.l.b16 %v287
  %v326 = vunpack.c.l.b16 %v288
  %v327 = vunpack.c.l.b16 %v289
  %v328 = vunpack.c.l.b16 %v290
  %v329 = vunpack.c.l.b16 %v291
  %v330 = vunpack.c.l.b16 %v292
  %v331 = vunpack.c.l.b16 %v293
  %v332 = vunpack.c.l.b16 %v294
  %v333 = vunpack.c.l.b16 %v295
  %v334 = vunpack.c.l.b16 %v296
  %v335 = vunpack.c.l.b16 %v297
  %v336 = vunpack.c.l.b16 %v298
  %v337 = vunpack.c.l.b16 %v299
  %v338 = vunpack.c.l.b16 %v300
  %v339 = vunpack.c.l.b16 %v301
  %v340 = vunpack.c.l.b16 %v302
  %v341 = vunpack.c.l.b16 %v303
  %v342 = vunpack.c.l.b16 %v304
  %v343 = vunpack.c.l.b16 %v305
  %v344 = vpack.c.b16 %v326, %v325
  %v345 = vpack.c.b16 %v328, %v327
  %v346 = vpack.c.b16 %v330, %v329
  %v347 = vpack.c.b16 %v332, %v331
  %v348 = vpack.c.b16 %v334, %v333
  %v349 = vpack.c.b16 %v336, %v335
  %v350 = vpack.c.b16 %v338, %v337
  %v351 = vpack.c.b16 %v340, %v339
  %v352 = vpack.c.b16 %v342, %v341
  %v353 = vpack.c.b16 %v343, %v343
  %v364 = vsel %vm118, %v353, 0
  %366 = vmatprep.subr.bf16.mxu0 0
  %367 = vmatpush1.bf16.msra.mxu0 %v351
  %368 = vmatprep.subr.bf16.mxu0 0
  %369 = vmatpush1.bf16.msra.mxu0 %v350
  %370 = vmatprep.subr.bf16.mxu0 0
  %371 = vmatpush1.bf16.msra.mxu0 %v349
  %372 = vmatprep.subr.bf16.mxu0 0
  %373 = vmatpush1.bf16.msra.mxu0 %v348
  %374 = vmatprep.subr.bf16.mxu0 0
  %375 = vmatpush1.bf16.msra.mxu0 %v347
  %376 = vmatprep.subr.bf16.mxu0 0
  %377 = vmatpush1.bf16.msra.mxu0 %v346
  %378 = vmatprep.subr.bf16.mxu0 0
  %379 = vmatpush1.bf16.msra.mxu0 %v345
  %380 = vmatprep.subr.bf16.mxu0 0
  %381 = vmatpush1.bf16.msra.mxu0 %v344
  %382 = vmatprep.subr.bf16.mxu0 0
  %383 = vmatpush2.bf16.msra.mxu0 0
  %384 = vmatprep.subr.bf16.mxu0 0
  %385 = vmatpush2.bf16.msra.mxu0 0
  %386 = vmatprep.subr.bf16.mxu0 0
  %387 = vmatpush2.bf16.msra.mxu0 0
  %388 = vmatprep.subr.bf16.mxu0 0
  %389 = vmatpush2.bf16.msra.mxu0 0
  %390 = vmatprep.subr.bf16.mxu0 0
  %391 = vmatpush2.bf16.msra.mxu0 0
  %392 = vmatprep.subr.bf16.mxu0 0
  %393 = vmatpush2.bf16.msra.mxu0 0
  %394 = vmatprep.subr.bf16.mxu0 0
  %395 = vmatpush2.bf16.msra.mxu0 %v364
  %396 = vmatprep.subr.bf16.mxu0 0
  %397 = vmatpush2.bf16.msra.mxu0 %v352
  %398 = vmatprep.mubr.bf16.mxu0 %v116
  %399 = vmatmul.mubr.bf16.gmra.mxu0 %v54
  %v400 = vpop.f32.mrf.mxu0
  %v401 = vadd.f32 %v41, %v400
  %v402 = vpop.f32.mrf.mxu0
  %v403 = vpop.f32.mrf.mxu0
  %v404 = vadd.f32 %v46, %v403
  %v405 = vpop.f32.mrf.mxu0
  %406 = vdwg.mxu0
  %s407 = scalar_lea.vmem %s0, 228
  %v408 = vld [vmem:[%s407] sm:$0xf]
  %v409 = vld [vmem:[%s407 + $0x4] sm:$0xf]
  %v410 = vld [vmem:[%s407 + $0x8] sm:$0xf]
  %v411 = vld [vmem:[%s407 + $0xc] sm:$0xf]
  %v412 = vld [vmem:[%s407 + $0x10] sm:$0xf]
  %v413 = vld [vmem:[%s407 + $0x14] sm:$0xf]
  %v414 = vld [vmem:[%s407 + $0x18] sm:$0xf]
  %v415 = vld [vmem:[%s407 + $0x1c] sm:$0xf]
  %v416 = vld [vmem:[%s407 + $0x20] sm:$0xf]
  %v417 = vld [vmem:[%s407 + $0x24] sm:$0xf]
  %v418 = vld [vmem:[%s407 + $0x28] sm:$0xf]
  %v419 = vld [vmem:[%s407 + $0x2c] sm:$0xf]
  %v420 = vld [vmem:[%s407 + $0x30] sm:$0xf]
  %v421 = vld [vmem:[%s407 + $0x34] sm:$0xf]
  %v422 = vld [vmem:[%s407 + $0x38] sm:$0xf]
  %v423 = vld [vmem:[%s407 + $0x3c] sm:$0xf]
  %v424 = vld [vmem:[%s407 + $0x40] sm:$0xf]
  %v425 = vld [vmem:[%s407 + $0x44] sm:$0xf]
  %v426 = vld [vmem:[%s407 + $0x48] sm:$0x7]
  %v446 = vunpack.c.l.b16 %v408
  %v447 = vunpack.c.l.b16 %v409
  %v448 = vunpack.c.l.b16 %v410
  %v449 = vunpack.c.l.b16 %v411
  %v450 = vunpack.c.l.b16 %v412
  %v451 = vunpack.c.l.b16 %v413
  %v452 = vunpack.c.l.b16 %v414
  %v453 = vunpack.c.l.b16 %v415
  %v454 = vunpack.c.l.b16 %v416
  %v455 = vunpack.c.l.b16 %v417
  %v456 = vunpack.c.l.b16 %v418
  %v457 = vunpack.c.l.b16 %v419
  %v458 = vunpack.c.l.b16 %v420
  %v459 = vunpack.c.l.b16 %v421
  %v460 = vunpack.c.l.b16 %v422
  %v461 = vunpack.c.l.b16 %v423
  %v462 = vunpack.c.l.b16 %v424
  %v463 = vunpack.c.l.b16 %v425
  %v464 = vunpack.c.l.b16 %v426
  %v465 = vpack.c.b16 %v447, %v446
  %v466 = vpack.c.b16 %v449, %v448
  %v467 = vpack.c.b16 %v451, %v450
  %v468 = vpack.c.b16 %v453, %v452
  %v469 = vpack.c.b16 %v455, %v454
  %v470 = vpack.c.b16 %v457, %v456
  %v471 = vpack.c.b16 %v459, %v458
  %v472 = vpack.c.b16 %v461, %v460
  %v473 = vpack.c.b16 %v463, %v462
  %v474 = vpack.c.b16 %v464, %v464
  %v485 = vsel %vm118, %v474, 0
  %487 = vmatprep.subr.bf16.mxu0 0
  %488 = vmatpush1.bf16.msra.mxu0 %v472
  %489 = vmatprep.subr.bf16.mxu0 0
  %490 = vmatpush1.bf16.msra.mxu0 %v471
  %491 = vmatprep.subr.bf16.mxu0 0
  %492 = vmatpush1.bf16.msra.mxu0 %v470
  %493 = vmatprep.subr.bf16.mxu0 0
  %494 = vmatpush1.bf16.msra.mxu0 %v469
  %495 = vmatprep.subr.bf16.mxu0 0
  %496 = vmatpush1.bf16.msra.mxu0 %v468
  %497 = vmatprep.subr.bf16.mxu0 0
  %498 = vmatpush1.bf16.msra.mxu0 %v467
  %499 = vmatprep.subr.bf16.mxu0 0
  %500 = vmatpush1.bf16.msra.mxu0 %v466
  %501 = vmatprep.subr.bf16.mxu0 0
  %502 = vmatpush1.bf16.msra.mxu0 %v465
  %503 = vmatprep.subr.bf16.mxu0 0
  %504 = vmatpush2.bf16.msra.mxu0 0
  %505 = vmatprep.subr.bf16.mxu0 0
  %506 = vmatpush2.bf16.msra.mxu0 0
  %507 = vmatprep.subr.bf16.mxu0 0
  %508 = vmatpush2.bf16.msra.mxu0 0
  %509 = vmatprep.subr.bf16.mxu0 0
  %510 = vmatpush2.bf16.msra.mxu0 0
  %511 = vmatprep.subr.bf16.mxu0 0
  %512 = vmatpush2.bf16.msra.mxu0 0
  %513 = vmatprep.subr.bf16.mxu0 0
  %514 = vmatpush2.bf16.msra.mxu0 0
  %515 = vmatprep.subr.bf16.mxu0 0
  %516 = vmatpush2.bf16.msra.mxu0 %v485
  %517 = vmatprep.subr.bf16.mxu0 0
  %518 = vmatpush2.bf16.msra.mxu0 %v473
  %519 = vmatprep.mubr.bf16.mxu0 %v116
  %520 = vmatmul.mubr.bf16.gmra.mxu0 %v54
  %v521 = vpop.f32.mrf.mxu0
  %v522 = vadd.f32 %v41, %v521
  %v523 = vpop.f32.mrf.mxu0
  %v524 = vpop.f32.mrf.mxu0
  %v525 = vadd.f32 %v46, %v524
  %v526 = vpop.f32.mrf.mxu0
  %527 = vdwg.mxu0
  %v528 = vmax.f32 %v401, %v522
  %v529 = vmax.f32 %v404, %v525
  %v530 = vmax.f32 %v284, %v528
  %v531 = vmax.f32 %v285, %v529
  %v532 = vmax.f32 %v530, 0.0
  %v533 = vmax.f32 %v531, 0.0
  %v534 = vpack.c.bf16 %v533, %v532
  %v536 = vunpack.c.l.b16 %v534
  %v537 = vunpack.c.h.b16 %v534
  %v538 = vpack.c.b16 %v536, %v536
  %v539 = vpack.c.b16 %v537, %v537
  %vm542 = vcmask 404480
  %543 = vst.msk [vmem:[%s3] sm:$0xf] %vm542, %v538
  %544 = vst.msk [vmem:[%s3 + $0x4] sm:$0xf] %vm542, %v539
  // Predicated region
  $region14: #{task_icons_net_forward.4} parent=0 // pred_check
    _
  $region15: #{task_icons_net_forward.4} parent=0 // pred_check_branch
    %546 = sbr.rel (0) target = $region17
  $region16: #{task_icons_net_forward.4} parent=0 // pred_region
    _
  $region17: #{task_icons_net_forward.4} parent=0 // pred_fallthru
    _
  // Predicated region
  $region18: #{task_icons_net_forward.4} parent=0 // pred_check
    _
  $region19: #{task_icons_net_forward.4} parent=0 // pred_check_branch
    %548 = sbr.rel (0) target = $region21
  $region20: #{task_icons_net_forward.4} parent=0 // pred_region
    _
  $region21: #{task_icons_net_forward.4} parent=0 // pred_fallthru
    _

// kernel: task_icons_net_forward.5
$region0: #{task_icons_net_forward.5}
  #allocation0 [shape = 'u32[]', space=smem, size = 0x4, offset = 0x4, fixed_abs, tag = 'smem constant byte address 0x4 - core index']
  #allocation1 [shape = 'u32[144,128]{1,0:T(1,128)}', space=vmem, size = 0x12000, scoped, tag = 'internal scratch']
  %s0 = inlined_call_operand.vmem [shape: bf16[2,400], index: 0, kind: input, shape index: {}]
  %s1 = inlined_call_operand.vmem [shape: bf16[400,128], index: 1, kind: input, shape index: {}]
  %s2 = inlined_call_operand.vmem [shape: f32[1,128], index: 2, kind: input, shape index: {}]
  %s3 = inlined_call_operand.vmem [shape: bf16[128,128], index: 3, kind: input, shape index: {}]
  %s4 = inlined_call_operand.vmem [shape: f32[1,128], index: 4, kind: input, shape index: {}]
  %s5 = inlined_call_operand.vmem [shape: bf16[128,128], index: 5, kind: input, shape index: {}]
  %s6 = inlined_call_operand.vmem [shape: f32[1,128], index: 6, kind: input, shape index: {}]
  %s7 = inlined_call_operand.hbm [shape: f32[2,128], index: 7, kind: output, shape index: {}]
  %s8 = sld [smem:[#allocation0]]
  $region38: #{task_icons_net_forward.5} parent=0
    _
  %s10 = ssub.s32 1, %s8
  %s11 = scalar_select 0, %s10, %s8
  $region1: #{task_icons_net_forward.5} parent=0
    #allocation2 [shape = 'u8[1024]{0}', space=vmem, size = 0x400, scoped, tag = 'output window, operand 0, single buffered']
    #allocation3 [shape = 's32[1]{0}', space=sflag, size = 0x4, scoped, tag = 'scoped memory for task_icons_net_forward.5']
    %12 = vsyncpa [#allocation3], 0
    // Predicated region
    $region2: #{task_icons_net_forward.5} parent=1 // pred_check
      _
    $region3: #{task_icons_net_forward.5} parent=1 // pred_check_branch
      %14 = sbr.rel (0) target = $region5
    $region4: #{task_icons_net_forward.5} parent=1 // pred_region
      _
    $region5: #{task_icons_net_forward.5} parent=1 // pred_fallthru
      _
    // Predicated region
    $region6: #{task_icons_net_forward.5} parent=1 // pred_check
      _
    $region7: #{task_icons_net_forward.5} parent=1 // pred_check_branch
      %16 = sbr.rel (0) target = $region9
    $region8: #{task_icons_net_forward.5} parent=1 // pred_region
      _
    $region9: #{task_icons_net_forward.5} parent=1 // pred_fallthru
      _
    // Predicated region
    $region10: #{task_icons_net_forward.5} parent=1 // pred_check
      _
    $region11: #{task_icons_net_forward.5} parent=1 // pred_check_branch
      %18 = sbr.rel (0) target = $region13
    $region12: #{task_icons_net_forward.5} parent=1 // pred_region
      _
    $region13: #{task_icons_net_forward.5} parent=1 // pred_fallthru
      _
    // Predicated region
    $region14: #{task_icons_net_forward.5} parent=1 // pred_check
      _
    $region15: #{task_icons_net_forward.5} parent=1 // pred_check_branch
      %20 = sbr.rel (0) target = $region17
    $region16: #{task_icons_net_forward.5} parent=1 // pred_region
      _
    $region17: #{task_icons_net_forward.5} parent=1 // pred_fallthru
      _
    // Predicated region
    $region18: #{task_icons_net_forward.5} parent=1 // pred_check
      _
    $region19: #{task_icons_net_forward.5} parent=1 // pred_check_branch
      %22 = sbr.rel (0) target = $region21
    $region20: #{task_icons_net_forward.5} parent=1 // pred_region
      _
    $region21: #{task_icons_net_forward.5} parent=1 // pred_fallthru
      _
    // Predicated region
    $region22: #{task_icons_net_forward.5} parent=1 // pred_check
      _
    $region23: #{task_icons_net_forward.5} parent=1 // pred_check_branch
      %24 = sbr.rel (0) target = $region25
    $region24: #{task_icons_net_forward.5} parent=1 // pred_region
      _
    $region25: #{task_icons_net_forward.5} parent=1 // pred_fallthru
      _
    // Predicated region
    $region26: #{task_icons_net_forward.5} parent=1 // pred_check
      _
    $region27: #{task_icons_net_forward.5} parent=1 // pred_check_branch
      %26 = sbr.rel (0) target = $region29
    $region28: #{task_icons_net_forward.5} parent=1 // pred_region
      _
    $region29: #{task_icons_net_forward.5} parent=1 // pred_fallthru
      _
    %v28 = vld [vmem:[%s0] sm:$0xf]
    %v29 = vld [vmem:[%s1] sm:$0xf]
    %v30 = vld [vmem:[%s1 + $0x4] sm:$0xf]
    %v31 = vld [vmem:[%s1 + $0x8] sm:$0xf]
    %v32 = vld [vmem:[%s1 + $0xc] sm:$0xf]
    %v33 = vld [vmem:[%s1 + $0x10] sm:$0xf]
    %v34 = vld [vmem:[%s1 + $0x14] sm:$0xf]
    %v35 = vld [vmem:[%s1 + $0x18] sm:$0xf]
    %v36 = vld [vmem:[%s1 + $0x1c] sm:$0xf]
    %v37 = vld [vmem:[%s1 + $0x20] sm:$0xf]
    %v38 = vld [vmem:[%s1 + $0x24] sm:$0xf]
    %v39 = vld [vmem:[%s1 + $0x28] sm:$0xf]
    %v40 = vld [vmem:[%s1 + $0x2c] sm:$0xf]
    %v41 = vld [vmem:[%s1 + $0x30] sm:$0xf]
    %v42 = vld [vmem:[%s1 + $0x34] sm:$0xf]
    %v43 = vld [vmem:[%s1 + $0x38] sm:$0xf]
    %v44 = vld [vmem:[%s1 + $0x3c] sm:$0xf]
    %v45 = vld [vmem:[%s1 + $0x40] sm:$0xf]
    %v46 = vld [vmem:[%s1 + $0x44] sm:$0xf]
    %v47 = vld [vmem:[%s1 + $0x48] sm:$0xf]
    %v48 = vld [vmem:[%s1 + $0x4c] sm:$0xf]
    %v49 = vld [vmem:[%s1 + $0x50] sm:$0xf]
    %v50 = vld [vmem:[%s1 + $0x54] sm:$0xf]
    %v51 = vld [vmem:[%s1 + $0x58] sm:$0xf]
    %v52 = vld [vmem:[%s1 + $0x5c] sm:$0xf]
    %v53 = vld [vmem:[%s1 + $0x60] sm:$0xf]
    %v54 = vld [vmem:[%s1 + $0x64] sm:$0xf]
    %v55 = vld [vmem:[%s1 + $0x68] sm:$0xf]
    %v56 = vld [vmem:[%s1 + $0x6c] sm:$0xf]
    %v57 = vld [vmem:[%s1 + $0x70] sm:$0xf]
    %v58 = vld [vmem:[%s1 + $0x74] sm:$0xf]
    %v59 = vld [vmem:[%s1 + $0x78] sm:$0xf]
    %v60 = vld [vmem:[%s1 + $0x7c] sm:$0xf]
    %v61 = vld [vmem:[%s1 + $0x80] sm:$0xf]
    %v62 = vld [vmem:[%s1 + $0x84] sm:$0xf]
    %v63 = vld [vmem:[%s1 + $0x88] sm:$0xf]
    %v64 = vld [vmem:[%s1 + $0x8c] sm:$0xf]
    %v65 = vld [vmem:[%s1 + $0x90] sm:$0xf]
    %v66 = vld [vmem:[%s1 + $0x94] sm:$0xf]
    %v67 = vld [vmem:[%s1 + $0x98] sm:$0xf]
    %v68 = vld [vmem:[%s1 + $0x9c] sm:$0xf]
    %v69 = vld [vmem:[%s1 + $0xa0] sm:$0xf]
    %v70 = vld [vmem:[%s1 + $0xa4] sm:$0xf]
    %v71 = vld [vmem:[%s1 + $0xa8] sm:$0xf]
    %v72 = vld [vmem:[%s1 + $0xac] sm:$0xf]
    %v73 = vld [vmem:[%s1 + $0xb0] sm:$0xf]
    %v74 = vld [vmem:[%s1 + $0xb4] sm:$0xf]
    %v75 = vld [vmem:[%s1 + $0xb8] sm:$0xf]
    %v76 = vld [vmem:[%s1 + $0xbc] sm:$0xf]
    %v77 = vld [vmem:[%s1 + $0xc0] sm:$0xf]
    %v78 = vld [vmem:[%s1 + $0xc4] sm:$0xf]
    %v79 = vld [vmem:[%s2] sm:$0x1]
    %v81 = vlaneseq
    %v82 = vshrl.u32 %v81, 7
    %v83 = vsub.s32 0, %v82
    %v84 = vrot.slane %v79, %v83
    %v88 = vunpack.c.l.s4 1966171168
    %v89 = vunpack.c.0.s8 %v88
    %v90 = vlaneseq
    %v91 = vshrl.u32 %v90, 7
    %v92 = vsub.s32 %v89, %v91
    %v93 = vrot.slane %v28, %v92
    %v94 = vcombine.high %v93, %v93
    %v96 = vunpack.c.l.s4 1966171168
    %v97 = vunpack.c.0.s8 %v96
    %v98 = vlaneseq
    %v99 = vshrl.u32 %v98, 7
    %v100 = vsub.s32 %v97, %v99
    %v101 = vrot.slane %v93, %v100
    %v103 = vunpack.c.l.s4 1966171168
    %v104 = vunpack.c.0.s8 %v103
    %v105 = vlaneseq
    %v106 = vshrl.u32 %v105, 7
    %v107 = vsub.s32 %v104, %v106
    %v108 = vrot.slane %v94, %v107
    %v109 = vcombine.high %v101, %v101
    %v110 = vcombine.high %v108, %v108
    %v164 = vunpack.c.l.b16 %v29
    %v165 = vunpack.c.l.b16 %v30
    %v166 = vunpack.c.l.b16 %v31
    %v167 = vunpack.c.l.b16 %v32
    %v168 = vunpack.c.l.b16 %v33
    %v169 = vunpack.c.l.b16 %v34
    %v170 = vunpack.c.l.b16 %v35
    %v171 = vunpack.c.l.b16 %v36
    %v172 = vunpack.c.l.b16 %v37
    %v173 = vunpack.c.l.b16 %v38
    %v174 = vunpack.c.l.b16 %v39
    %v175 = vunpack.c.l.b16 %v40
    %v176 = vunpack.c.l.b16 %v41
    %v177 = vunpack.c.l.b16 %v42
    %v178 = vunpack.c.l.b16 %v43
    %v179 = vunpack.c.l.b16 %v44
    %v180 = vunpack.c.l.b16 %v45
    %v181 = vunpack.c.l.b16 %v46
    %v182 = vunpack.c.l.b16 %v47
    %v183 = vunpack.c.l.b16 %v48
    %v184 = vunpack.c.l.b16 %v49
    %v185 = vunpack.c.l.b16 %v50
    %v186 = vunpack.c.l.b16 %v51
    %v187 = vunpack.c.l.b16 %v52
    %v188 = vunpack.c.l.b16 %v53
    %v189 = vunpack.c.l.b16 %v54
    %v190 = vunpack.c.l.b16 %v55
    %v191 = vunpack.c.l.b16 %v56
    %v192 = vunpack.c.l.b16 %v57
    %v193 = vunpack.c.l.b16 %v58
    %v194 = vunpack.c.l.b16 %v59
    %v195 = vunpack.c.l.b16 %v60
    %v196 = vunpack.c.l.b16 %v61
    %v197 = vunpack.c.l.b16 %v62
    %v198 = vunpack.c.l.b16 %v63
    %v199 = vunpack.c.l.b16 %v64
    %v200 = vunpack.c.l.b16 %v65
    %v201 = vunpack.c.l.b16 %v66
    %v202 = vunpack.c.l.b16 %v67
    %v203 = vunpack.c.l.b16 %v68
    %v204 = vunpack.c.l.b16 %v69
    %v205 = vunpack.c.l.b16 %v70
    %v206 = vunpack.c.l.b16 %v71
    %v207 = vunpack.c.l.b16 %v72
    %v208 = vunpack.c.l.b16 %v73
    %v209 = vunpack.c.l.b16 %v74
    %v210 = vunpack.c.l.b16 %v75
    %v211 = vunpack.c.l.b16 %v76
    %v212 = vunpack.c.l.b16 %v77
    %v213 = vunpack.c.l.b16 %v78
    %v214 = vpack.c.b16 %v165, %v164
    %v215 = vpack.c.b16 %v167, %v166
    %v216 = vpack.c.b16 %v169, %v168
    %v217 = vpack.c.b16 %v171, %v170
    %v218 = vpack.c.b16 %v173, %v172
    %v219 = vpack.c.b16 %v175, %v174
    %v220 = vpack.c.b16 %v177, %v176
    %v221 = vpack.c.b16 %v179, %v178
    %v222 = vpack.c.b16 %v181, %v180
    %v223 = vpack.c.b16 %v183, %v182
    %v224 = vpack.c.b16 %v185, %v184
    %v225 = vpack.c.b16 %v187, %v186
    %v226 = vpack.c.b16 %v189, %v188
    %v227 = vpack.c.b16 %v191, %v190
    %v228 = vpack.c.b16 %v193, %v192
    %v229 = vpack.c.b16 %v195, %v194
    %v230 = vpack.c.b16 %v197, %v196
    %v231 = vpack.c.b16 %v199, %v198
    %v232 = vpack.c.b16 %v201, %v200
    %v233 = vpack.c.b16 %v203, %v202
    %v234 = vpack.c.b16 %v205, %v204
    %v235 = vpack.c.b16 %v207, %v206
    %v236 = vpack.c.b16 %v209, %v208
    %v237 = vpack.c.b16 %v211, %v210
    %v238 = vpack.c.b16 %v213, %v212
    %vm264 = vcmask 130048
    %v266 = vsel %vm264, %v110, 0
    %268 = vmatprep.subr.bf16.mxu0 0
    %269 = vmatpush1.bf16.msra.mxu0 %v221
    %270 = vmatprep.subr.bf16.mxu0 0
    %271 = vmatpush1.bf16.msra.mxu0 %v220
    %272 = vmatprep.subr.bf16.mxu0 0
    %273 = vmatpush1.bf16.msra.mxu0 %v219
    %274 = vmatprep.subr.bf16.mxu0 0
    %275 = vmatpush1.bf16.msra.mxu0 %v218
    %276 = vmatprep.subr.bf16.mxu0 0
    %277 = vmatpush1.bf16.msra.mxu0 %v217
    %278 = vmatprep.subr.bf16.mxu0 0
    %279 = vmatpush1.bf16.msra.mxu0 %v216
    %280 = vmatprep.subr.bf16.mxu0 0
    %281 = vmatpush1.bf16.msra.mxu0 %v215
    %282 = vmatprep.subr.bf16.mxu0 0
    %283 = vmatpush1.bf16.msra.mxu0 %v214
    %284 = vmatprep.subr.bf16.mxu0 0
    %285 = vmatpush2.bf16.msra.mxu0 %v229
    %286 = vmatprep.subr.bf16.mxu0 0
    %287 = vmatpush2.bf16.msra.mxu0 %v228
    %288 = vmatprep.subr.bf16.mxu0 0
    %289 = vmatpush2.bf16.msra.mxu0 %v227
    %290 = vmatprep.subr.bf16.mxu0 0
    %291 = vmatpush2.bf16.msra.mxu0 %v226
    %292 = vmatprep.subr.bf16.mxu0 0
    %293 = vmatpush2.bf16.msra.mxu0 %v225
    %294 = vmatprep.subr.bf16.mxu0 0
    %295 = vmatpush2.bf16.msra.mxu0 %v224
    %296 = vmatprep.subr.bf16.mxu0 0
    %297 = vmatpush2.bf16.msra.mxu0 %v223
    %298 = vmatprep.subr.bf16.mxu0 0
    %299 = vmatpush2.bf16.msra.mxu0 %v222
    %300 = vmatprep.mubr.bf16.mxu0 %v108
    %301 = vmatmul.mubr.bf16.gmra.mxu0 %v101
    %v302 = vpop.f32.mrf.mxu0
    %v303 = vadd.f32 %v84, %v302
    %v304 = vpop.f32.mrf.mxu0
    %v305 = vpop.f32.mrf.mxu0
    %v306 = vpop.f32.mrf.mxu0
    %307 = vdwg.mxu0
    %308 = vmatprep.subr.bf16.mxu0 0
    %309 = vmatpush1.bf16.msra.mxu0 %v237
    %310 = vmatprep.subr.bf16.mxu0 0
    %311 = vmatpush1.bf16.msra.mxu0 %v236
    %312 = vmatprep.subr.bf16.mxu0 0
    %313 = vmatpush1.bf16.msra.mxu0 %v235
    %314 = vmatprep.subr.bf16.mxu0 0
    %315 = vmatpush1.bf16.msra.mxu0 %v234
    %316 = vmatprep.subr.bf16.mxu0 0
    %317 = vmatpush1.bf16.msra.mxu0 %v233
    %318 = vmatprep.subr.bf16.mxu0 0
    %319 = vmatpush1.bf16.msra.mxu0 %v232
    %320 = vmatprep.subr.bf16.mxu0 0
    %321 = vmatpush1.bf16.msra.mxu0 %v231
    %322 = vmatprep.subr.bf16.mxu0 0
    %323 = vmatpush1.bf16.msra.mxu0 %v230
    %324 = vmatprep.subr.bf16.mxu0 0
    %325 = vmatpush2.bf16.msra.mxu0 0
    %326 = vmatprep.subr.bf16.mxu0 0
    %327 = vmatpush2.bf16.msra.mxu0 0
    %328 = vmatprep.subr.bf16.mxu0 0
    %329 = vmatpush2.bf16.msra.mxu0 0
    %330 = vmatprep.subr.bf16.mxu0 0
    %331 = vmatpush2.bf16.msra.mxu0 0
    %332 = vmatprep.subr.bf16.mxu0 0
    %333 = vmatpush2.bf16.msra.mxu0 0
    %334 = vmatprep.subr.bf16.mxu0 0
    %335 = vmatpush2.bf16.msra.mxu0 0
    %336 = vmatprep.subr.bf16.mxu0 0
    %337 = vmatpush2.bf16.msra.mxu0 0
    %338 = vmatprep.subr.bf16.mxu0 0
    %339 = vmatpush2.bf16.msra.mxu0 %v238
    %340 = vmatprep.mubr.bf16.mxu0 %v266
    %341 = vmatmul.mubr.bf16.gmra.mxu0 %v109
    %v342 = vpop.f32.mrf.mxu0
    %v343 = vadd.f32 %v303, %v342
    %v344 = vpop.f32.mrf.mxu0
    %v345 = vpop.f32.mrf.mxu0
    %v346 = vpop.f32.mrf.mxu0
    %347 = vdwg.mxu0
    %v348 = vmax.f32 %v343, 0.0
    %v349 = vpack.c.bf16 %v348, %v348
    %v350 = vld [vmem:[%s3] sm:$0xf]
    %v351 = vld [vmem:[%s3 + $0x4] sm:$0xf]
    %v352 = vld [vmem:[%s3 + $0x8] sm:$0xf]
    %v353 = vld [vmem:[%s3 + $0xc] sm:$0xf]
    %v354 = vld [vmem:[%s3 + $0x10] sm:$0xf]
    %v355 = vld [vmem:[%s3 + $0x14] sm:$0xf]
    %v356 = vld [vmem:[%s3 + $0x18] sm:$0xf]
    %v357 = vld [vmem:[%s3 + $0x1c] sm:$0xf]
    %v358 = vld [vmem:[%s3 + $0x20] sm:$0xf]
    %v359 = vld [vmem:[%s3 + $0x24] sm:$0xf]
    %v360 = vld [vmem:[%s3 + $0x28] sm:$0xf]
    %v361 = vld [vmem:[%s3 + $0x2c] sm:$0xf]
    %v362 = vld [vmem:[%s3 + $0x30] sm:$0xf]
    %v363 = vld [vmem:[%s3 + $0x34] sm:$0xf]
    %v364 = vld [vmem:[%s3 + $0x38] sm:$0xf]
    %v365 = vld [vmem:[%s3 + $0x3c] sm:$0xf]
    %v366 = vld [vmem:[%s4] sm:$0x1]
    %v368 = vlaneseq
    %v369 = vshrl.u32 %v368, 7
    %v370 = vsub.s32 0, %v369
    %v371 = vrot.slane %v366, %v370
    %v389 = vunpack.c.l.b16 %v350
    %v390 = vunpack.c.l.b16 %v351
    %v391 = vunpack.c.l.b16 %v352
    %v392 = vunpack.c.l.b16 %v353
    %v393 = vunpack.c.l.b16 %v354
    %v394 = vunpack.c.l.b16 %v355
    %v395 = vunpack.c.l.b16 %v356
    %v396 = vunpack.c.l.b16 %v357
    %v397 = vunpack.c.l.b16 %v358
    %v398 = vunpack.c.l.b16 %v359
    %v399 = vunpack.c.l.b16 %v360
    %v400 = vunpack.c.l.b16 %v361
    %v401 = vunpack.c.l.b16 %v362
    %v402 = vunpack.c.l.b16 %v363
    %v403 = vunpack.c.l.b16 %v364
    %v404 = vunpack.c.l.b16 %v365
    %v405 = vpack.c.b16 %v390, %v389
    %v406 = vpack.c.b16 %v392, %v391
    %v407 = vpack.c.b16 %v394, %v393
    %v408 = vpack.c.b16 %v396, %v395
    %v409 = vpack.c.b16 %v398, %v397
    %v410 = vpack.c.b16 %v400, %v399
    %v411 = vpack.c.b16 %v402, %v401
    %v412 = vpack.c.b16 %v404, %v403
    %421 = vmatprep.subr.bf16.mxu0 0
    %422 = vmatpush1.bf16.msra.mxu0 %v412
    %423 = vmatprep.subr.bf16.mxu0 0
    %424 = vmatpush1.bf16.msra.mxu0 %v411
    %425 = vmatprep.subr.bf16.mxu0 0
    %426 = vmatpush1.bf16.msra.mxu0 %v410
    %427 = vmatprep.subr.bf16.mxu0 0
    %428 = vmatpush1.bf16.msra.mxu0 %v409
    %429 = vmatprep.subr.bf16.mxu0 0
    %430 = vmatpush1.bf16.msra.mxu0 %v408
    %431 = vmatprep.subr.bf16.mxu0 0
    %432 = vmatpush1.bf16.msra.mxu0 %v407
    %433 = vmatprep.subr.bf16.mxu0 0
    %434 = vmatpush1.bf16.msra.mxu0 %v406
    %435 = vmatprep.subr.bf16.mxu0 0
    %436 = vmatpush1.bf16.msra.mxu0 %v405
    %437 = vmatprep.subr.bf16.mxu0 0
    %438 = vmatpush2.bf16.msra.mxu0 0
    %439 = vmatprep.subr.bf16.mxu0 0
    %440 = vmatpush2.bf16.msra.mxu0 0
    %441 = vmatprep.subr.bf16.mxu0 0
    %442 = vmatpush2.bf16.msra.mxu0 0
    %443 = vmatprep.subr.bf16.mxu0 0
    %444 = vmatpush2.bf16.msra.mxu0 0
    %445 = vmatprep.subr.bf16.mxu0 0
    %446 = vmatpush2.bf16.msra.mxu0 0
    %447 = vmatprep.subr.bf16.mxu0 0
    %448 = vmatpush2.bf16.msra.mxu0 0
    %449 = vmatprep.subr.bf16.mxu0 0
    %450 = vmatpush2.bf16.msra.mxu0 0
    %451 = vmatprep.subr.bf16.mxu0 0
    %452 = vmatpush2.bf16.msra.mxu0 0
    %453 = vmatprep.mubr.bf16.mxu0 0
    %454 = vmatmul.mubr.bf16.gmra.mxu0 %v349
    %v455 = vpop.f32.mrf.mxu0
    %v456 = vadd.f32 %v371, %v455
    %v457 = vpop.f32.mrf.mxu0
    %v458 = vpop.f32.mrf.mxu0
    %v459 = vpop.f32.mrf.mxu0
    %460 = vdwg.mxu0
    %v461 = vmax.f32 %v456, 0.0
    %v462 = vpack.c.bf16 %v461, %v461
    %v463 = vld [vmem:[%s5] sm:$0xf]
    %v464 = vld [vmem:[%s5 + $0x4] sm:$0xf]
    %v465 = vld [vmem:[%s5 + $0x8] sm:$0xf]
    %v466 = vld [vmem:[%s5 + $0xc] sm:$0xf]
    %v467 = vld [vmem:[%s5 + $0x10] sm:$0xf]
    %v468 = vld [vmem:[%s5 + $0x14] sm:$0xf]
    %v469 = vld [vmem:[%s5 + $0x18] sm:$0xf]
    %v470 = vld [vmem:[%s5 + $0x1c] sm:$0xf]
    %v471 = vld [vmem:[%s5 + $0x20] sm:$0xf]
    %v472 = vld [vmem:[%s5 + $0x24] sm:$0xf]
    %v473 = vld [vmem:[%s5 + $0x28] sm:$0xf]
    %v474 = vld [vmem:[%s5 + $0x2c] sm:$0xf]
    %v475 = vld [vmem:[%s5 + $0x30] sm:$0xf]
    %v476 = vld [vmem:[%s5 + $0x34] sm:$0xf]
    %v477 = vld [vmem:[%s5 + $0x38] sm:$0xf]
    %v478 = vld [vmem:[%s5 + $0x3c] sm:$0xf]
    %v479 = vld [vmem:[%s6] sm:$0x1]
    %v481 = vlaneseq
    %v482 = vshrl.u32 %v481, 7
    %v483 = vsub.s32 0, %v482
    %v484 = vrot.slane %v479, %v483
    %v502 = vunpack.c.l.b16 %v463
    %v503 = vunpack.c.l.b16 %v464
    %v504 = vunpack.c.l.b16 %v465
    %v505 = vunpack.c.l.b16 %v466
    %v506 = vunpack.c.l.b16 %v467
    %v507 = vunpack.c.l.b16 %v468
    %v508 = vunpack.c.l.b16 %v469
    %v509 = vunpack.c.l.b16 %v470
    %v510 = vunpack.c.l.b16 %v471
    %v511 = vunpack.c.l.b16 %v472
    %v512 = vunpack.c.l.b16 %v473
    %v513 = vunpack.c.l.b16 %v474
    %v514 = vunpack.c.l.b16 %v475
    %v515 = vunpack.c.l.b16 %v476
    %v516 = vunpack.c.l.b16 %v477
    %v517 = vunpack.c.l.b16 %v478
    %v518 = vpack.c.b16 %v503, %v502
    %v519 = vpack.c.b16 %v505, %v504
    %v520 = vpack.c.b16 %v507, %v506
    %v521 = vpack.c.b16 %v509, %v508
    %v522 = vpack.c.b16 %v511, %v510
    %v523 = vpack.c.b16 %v513, %v512
    %v524 = vpack.c.b16 %v515, %v514
    %v525 = vpack.c.b16 %v517, %v516
    %534 = vmatprep.subr.bf16.mxu0 0
    %535 = vmatpush1.bf16.msra.mxu0 %v525
    %536 = vmatprep.subr.bf16.mxu0 0
    %537 = vmatpush1.bf16.msra.mxu0 %v524
    %538 = vmatprep.subr.bf16.mxu0 0
    %539 = vmatpush1.bf16.msra.mxu0 %v523
    %540 = vmatprep.subr.bf16.mxu0 0
    %541 = vmatpush1.bf16.msra.mxu0 %v522
    %542 = vmatprep.subr.bf16.mxu0 0
    %543 = vmatpush1.bf16.msra.mxu0 %v521
    %544 = vmatprep.subr.bf16.mxu0 0
    %545 = vmatpush1.bf16.msra.mxu0 %v520
    %546 = vmatprep.subr.bf16.mxu0 0
    %547 = vmatpush1.bf16.msra.mxu0 %v519
    %548 = vmatprep.subr.bf16.mxu0 0
    %549 = vmatpush1.bf16.msra.mxu0 %v518
    %550 = vmatprep.subr.bf16.mxu0 0
    %551 = vmatpush2.bf16.msra.mxu0 0
    %552 = vmatprep.subr.bf16.mxu0 0
    %553 = vmatpush2.bf16.msra.mxu0 0
    %554 = vmatprep.subr.bf16.mxu0 0
    %555 = vmatpush2.bf16.msra.mxu0 0
    %556 = vmatprep.subr.bf16.mxu0 0
    %557 = vmatpush2.bf16.msra.mxu0 0
    %558 = vmatprep.subr.bf16.mxu0 0
    %559 = vmatpush2.bf16.msra.mxu0 0
    %560 = vmatprep.subr.bf16.mxu0 0
    %561 = vmatpush2.bf16.msra.mxu0 0
    %562 = vmatprep.subr.bf16.mxu0 0
    %563 = vmatpush2.bf16.msra.mxu0 0
    %564 = vmatprep.subr.bf16.mxu0 0
    %565 = vmatpush2.bf16.msra.mxu0 0
    %566 = vmatprep.mubr.bf16.mxu0 0
    %567 = vmatmul.mubr.bf16.gmra.mxu0 %v462
    %v568 = vpop.f32.mrf.mxu0
    %v569 = vadd.f32 %v484, %v568
    %v570 = vpop.f32.mrf.mxu0
    %v571 = vpop.f32.mrf.mxu0
    %v572 = vpop.f32.mrf.mxu0
    %573 = vdwg.mxu0
    %574 = vst [vmem:[#allocation2] sm:$0x3] %v569
    // Predicated region
    $region30: #{task_icons_net_forward.5} parent=1 // pred_check
      _
    $region31: #{task_icons_net_forward.5} parent=1 // pred_check_branch
      %576 = sbr.rel (0) target = $region33
    $region32: #{task_icons_net_forward.5} parent=1 // pred_region
      %s578 = ssub.s32 32, 32
      %579 = vsyncadd [#allocation3], %s578
      %s581 = sshll.u32 [#allocation2], 4
      %s582 = int_to_ptr.vmem [resolvable:$true] %s581
      %584 = dma.vmem_to_hbm [thread:$0]  %s582, 32, %s7, [#allocation3]
    $region33: #{task_icons_net_forward.5} parent=1 // pred_fallthru
      _
    // Predicated region
    $region34: #{task_icons_net_forward.5} parent=1 // pred_check
      _
    $region35: #{task_icons_net_forward.5} parent=1 // pred_check_branch
      %586 = sbr.rel (0) target = $region37
    $region36: #{task_icons_net_forward.5} parent=1 // pred_region
      %587 = dma.done [#allocation3], 32
    $region37: #{task_icons_net_forward.5} parent=1 // pred_fallthru
      _
    %588 = vsyncpa [#allocation3], 1

</llo_original>
